<compile_context>
chip_gen: v7x
topology: tpu7x:2x2x1
jax: 0.10.0
libtpu: 0.0.40
codegen_flags: <defaults>
</compile_context>

<pallas_src>
import functools

import jax
import jax.numpy as jnp
from jax.experimental import pallas as pl
from jax.experimental.pallas import tpu as pltpu


def _round_up(x, m):
    return ((x + m - 1) // m) * m


_NEG = -1e30          # finite "minus infinity" sentinel (plain Python float!)
_BIG_INT = 2 ** 30    # argmin sentinel for index selects


def _vmem_capacity_bytes():
    try:
        info = pltpu.get_tpu_info()
        cap = getattr(info, "vmem_capacity_bytes", None)
        if cap:
            return int(cap)
    except Exception:
        pass
    return 64 * 2 ** 20   # conservative (v7x-sized) fallback


# ---------------------------------------------------------------------------
# Pallas kernel 1: column stats (online col-logsumexp + col-argmax of P) and
#                  per-row logsumexp.
#                  grid = (halves "parallel", row-tiles "arbitrary")
# ---------------------------------------------------------------------------
def _dual_softmax_stats_kernel(d0_ref, d1_ref,
                               col_lse_ref, col_best_ref, col_arg_ref,
                               row_lse_ref,
                               m_scr, l_scr,
                               *, n_rows, tile_rows, tiles_per_half):
    h = pl.program_id(0)
    i = pl.program_id(1)
    n1 = d1_ref.shape[0]
    tile_idx = h * tiles_per_half + i

    # similarity tile; inv_temperature is pre-folded into d0 on the host.
    s = jax.lax.dot_general(
        d0_ref[...], d1_ref[...], (((1,), (1,)), ((), ())),
        preferred_element_type=jnp.float32)                       # (tm, n1)

    row_ids = (jax.lax.broadcasted_iota(jnp.int32, (tile_rows, 1), 0)
               + tile_idx * tile_rows)                             # (tm, 1)
    valid = row_ids < n_rows                                       # (tm, 1)

    # ---- per-row logsumexp (the ONLY full-tile exp in this kernel) --------
    row_max = jnp.max(s, axis=1, keepdims=True)                    # (tm, 1)
    e = jnp.exp(s - row_max)                                       # (tm, n1)
    row_lse = row_max + jnp.log(jnp.sum(e, axis=1, keepdims=True))  # (tm, 1)
    row_lse_ref[...] = row_lse

    # ---- init per-half accumulators ---------------------------------------
    @pl.when(i == 0)
    def _():
        m_scr[...] = jnp.full(m_scr.shape, _NEG, m_scr.dtype)
        l_scr[...] = jnp.zeros(l_scr.shape, l_scr.dtype)
        col_best_ref[...] = jnp.full((1, n1), _NEG, jnp.float32)
        col_arg_ref[...] = jnp.zeros((1, n1), jnp.int32)

    # ---- online per-column logsumexp, reusing e ----------------------------
    # sum_i exp(s[i,j] - m_new[j]) = exp(C - m_new[j]) * sum_i exp(s[i,j] - C)
    # with the tile-scalar shift C = max(s); exp(s - C) = e * exp(row_max - C)
    # costs only a (tm,1) exp + one full-tile multiply.  Exact as long as the
    # per-tile score spread is < ~80 nats (always true for L2-normalised
    # descriptors at inv_temperature ~ 20-40); the clamp only guards overflow.
    tile_cmax = jnp.max(s, axis=0, keepdims=True)                  # (1, n1)
    m_old = m_scr[...]
    m_new = jnp.maximum(m_old, tile_cmax)                          # (1, n1)
    c = jnp.max(row_max)                                           # scalar
    rscale = jnp.where(valid, jnp.exp(row_max - c), 0.0)           # (tm, 1)
    col_sum_c = jnp.sum(e * rscale, axis=0, keepdims=True)         # (1, n1)
    cscale = jnp.exp(jnp.minimum(c - m_new, 80.0))                 # (1, n1)
    l_scr[...] = l_scr[...] * jnp.exp(m_old - m_new) + col_sum_c * cscale
    m_scr[...] = m_new

    # ---- running column-winner of P (column argmax) ------------------------
    # log P[i,j] = 2*s - row_lse[i] - col_lse[j]; per-column constants drop, so
    # q = s - 0.5*row_lse is a monotone surrogate for the column argmax.
    q = jnp.where(valid, s - 0.5 * row_lse, _NEG)                  # (tm, n1)
    tile_best = jnp.max(q, axis=0, keepdims=True)                  # (1, n1)
    tile_arg = jnp.min(jnp.where(q == tile_best, row_ids, _BIG_INT),
                       axis=0, keepdims=True)                      # (1, n1)
    better = tile_best > col_best_ref[...]
    col_best_ref[...] = jnp.where(better, tile_best, col_best_ref[...])
    col_arg_ref[...] = jnp.where(better, tile_arg, col_arg_ref[...])

    @pl.when(i == pl.num_programs(1) - 1)
    def _():
        col_lse_ref[...] = m_scr[...] + jnp.log(l_scr[...])


# ---------------------------------------------------------------------------
# Pallas kernel 2: per-row argmax of P + winner probability.
#                  Transposed (n1, tm) orientation so the per-row outputs are
#                  stored lane-dense as (1, tm) blocks; grid axis "parallel".
# ---------------------------------------------------------------------------
def _dual_softmax_match_kernel(d0_ref, d1_ref, hcol_lse_ref, row_lse_ref,
                               row_arg_ref, row_p_ref):
    # s_t[j, i] = <d1[j], d0[i]>  (inv_temperature pre-folded into d0)
    s_t = jax.lax.dot_general(
        d1_ref[...], d0_ref[...], (((1,), (1,)), ((), ())),
        preferred_element_type=jnp.float32)                        # (n1, tm)

    # log P[i,j] = 2*s - row_lse[i] - col_lse[j]; per-row constants drop, so
    # r = s - 0.5*col_lse ranks the row argmax.
    r = s_t - hcol_lse_ref[...]                                    # (n1, tm)
    r_best = jnp.max(r, axis=0, keepdims=True)                     # (1, tm)
    cand = jax.lax.broadcasted_iota(jnp.int32, (r.shape[0], 1), 0)  # (n1, 1)
    row_arg_ref[...] = jnp.min(jnp.where(r == r_best, cand, _BIG_INT),
                               axis=0, keepdims=True)              # (1, tm)
    # winner probability P[i, j*] = exp(2*r_best - row_lse)  -- (1, tm) exp only
    row_p_ref[...] = jnp.exp(2.0 * r_best - row_lse_ref[...])


def dual_softmax_pallas(desc0, desc1, inv_temperature, thr, row_tile=None):
    """Mutual-nearest-neighbour matches from dual-softmax without materializing
    the dense P matrix in HBM.  Returns (inds (M,2) int32, mconf (M,))."""
    n0, d = desc0.shape
    n1 = desc1.shape[0]
    d_pad = _round_up(max(d, 1), 128)            # lane-dense MXU contraction

    cap = _vmem_capacity_bytes()
    vmem_limit = int(cap * 3 // 4)               # ~48 MiB on v7x, ~96 MiB on v5e/v6e

    def _tile_bytes(t):
        # ~4 live (t, n1) f32 temporaries + double-buffered bf16 inputs + accumulators
        return 4 * t * n1 * 4 + 2 * (t + n1) * d_pad * 2 + 8 * n1 * 4

    if row_tile is None:
        tm = 512
        while tm > 128 and _tile_bytes(tm) > (vmem_limit * 3) // 5:
            tm //= 2
    else:
        tm = int(row_tile)

    if n0 <= tm:
        tm = _round_up(max(n0, 16), 16)          # single tile; bf16 sublane tile is 16
        n_tiles = 1
    else:
        tm = max(128, (tm // 128) * 128)         # lane-dense (1, tm) row outputs need 128-multiples
        n_tiles = -(-n0 // tm)

    n_halves = 2 if n_tiles >= 2 else 1          # use both v7x TensorCores in pass 1
    tiles_per_half = -(-n_tiles // n_halves)
    n_tiles_total = n_halves * tiles_per_half
    n0_pad = n_tiles_total * tm

    # bf16 descriptors feed the MXU natively (f32 accumulation inside the
    # kernels); inv_temperature is folded into desc0 here so the kernels never
    # touch a full-tile scale.
    d0 = jnp.zeros((n0_pad, d_pad), jnp.bfloat16)
    d0 = d0.at[:n0, :d].set(
        (desc0.astype(jnp.float32) * float(inv_temperature)).astype(jnp.bfloat16))
    d1 = jnp.zeros((n1, d_pad), jnp.bfloat16)
    d1 = d1.at[:, :d].set(desc1.astype(jnp.bfloat16))

    # TODO(synk): d1 / col_lse / row_lse are grid-invariant; pipeline_mode=
    # pl.Buffered(1) would drop their second pipeline buffer and reclaim VMEM.

    # ---- pass 1: column stats + row logsumexp ------------------------------
    col_lse_parts, col_best_parts, col_arg_parts, row_lse_col = pl.pallas_call(
        functools.partial(_dual_softmax_stats_kernel,
                          n_rows=n0, tile_rows=tm,
                          tiles_per_half=tiles_per_half),
        grid=(n_halves, tiles_per_half),
        in_specs=[pl.BlockSpec((tm, d_pad),
                               lambda h, i: (h * tiles_per_half + i, 0)),
                  pl.BlockSpec((n1, d_pad), lambda h, i: (0, 0))],
        out_specs=(pl.BlockSpec((None, 1, n1), lambda h, i: (h, 0, 0)),
                   pl.BlockSpec((None, 1, n1), lambda h, i: (h, 0, 0)),
                   pl.BlockSpec((None, 1, n1), lambda h, i: (h, 0, 0)),
                   pl.BlockSpec((tm, 1),
                                lambda h, i: (h * tiles_per_half + i, 0))),
        out_shape=(jax.ShapeDtypeStruct((n_halves, 1, n1), jnp.float32),  # col_lse
                   jax.ShapeDtypeStruct((n_halves, 1, n1), jnp.float32),  # col best q
                   jax.ShapeDtypeStruct((n_halves, 1, n1), jnp.int32),    # col argmax
                   jax.ShapeDtypeStruct((n0_pad, 1), jnp.float32)),       # row_lse
        scratch_shapes=[pltpu.VMEM((1, n1), jnp.float32),
                        pltpu.VMEM((1, n1), jnp.float32)],
        compiler_params=pltpu.CompilerParams(
            dimension_semantics=("parallel", "arbitrary"),
            vmem_limit_bytes=vmem_limit),
    )(d0, d1)

    # ---- merge the per-half column stats (O(n1), plain JAX) ----------------
    if n_halves == 1:
        col_lse = col_lse_parts[0, 0]
        col_arg = col_arg_parts[0, 0]
    else:
        col_lse = jnp.logaddexp(col_lse_parts[0, 0], col_lse_parts[1, 0])
        pick0 = col_best_parts[0, 0] >= col_best_parts[1, 0]
        col_arg = jnp.where(pick0, col_arg_parts[0, 0], col_arg_parts[1, 0])

    half_col_lse = (0.5 * col_lse).reshape(n1, 1).astype(jnp.float32)
    row_lse_lane = row_lse_col.reshape(1, n0_pad)       # lane-dense for pass 2

    # ---- pass 2: per-row argmax + winner probability -----------------------
    row_arg2, row_p2 = pl.pallas_call(
        _dual_softmax_match_kernel,
        grid=(n_tiles_total,),
        in_specs=[pl.BlockSpec((tm, d_pad), lambda i: (i, 0)),
                  pl.BlockSpec((n1, d_pad), lambda i: (0, 0)),
                  pl.BlockSpec((n1, 1), lambda i: (0, 0)),
                  pl.BlockSpec((1, tm), lambda i: (0, i))],
        out_specs=(pl.BlockSpec((1, tm), lambda i: (0, i)),
                   pl.BlockSpec((1, tm), lambda i: (0, i))),
        out_shape=(jax.ShapeDtypeStruct((1, n0_pad), jnp.int32),    # row argmax
                   jax.ShapeDtypeStruct((1, n0_pad), jnp.float32)),  # winner P
        compiler_params=pltpu.CompilerParams(
            dimension_semantics=("parallel",),     # independent row tiles (megacore)
            vmem_limit_bytes=vmem_limit),
    )(d0, d1, half_col_lse, row_lse_lane)

    row_arg = row_arg2[0, :n0]
    row_p = row_p2[0, :n0]

    # Mutual-nearest-neighbour + threshold (argmax form of the reference's
    # (P == rowmax) & (P == colmax) & (P >= thr); identical up to exact ties).
    mutual = col_arg[row_arg] == jnp.arange(n0, dtype=jnp.int32)
    keep = mutual & (row_p >= thr)
    rows = jnp.nonzero(keep)[0]                   # dynamic-shape glue (outside jit)
    inds = jnp.stack([rows.astype(jnp.int32), row_arg[rows].astype(jnp.int32)],
                     axis=1)
    return inds, row_p[rows]


# ---------------------------------------------------------------------------
# Plain-XLA dual softmax for tiny problems (the sparse branch): two pallas_call
# launches cost more than the whole dense matrix at these sizes.
# ---------------------------------------------------------------------------
def _dual_softmax_xla(desc0, desc1, inv_temperature, thr):
    sim = (desc0.astype(jnp.float32) @ desc1.astype(jnp.float32).T) \
        * float(inv_temperature)
    P = jax.nn.softmax(sim, axis=0) * jax.nn.softmax(sim, axis=1)
    keep = ((P == P.max(axis=1, keepdims=True))
            & (P == P.max(axis=0, keepdims=True))
            & (P >= thr))
    rows, cols = jnp.nonzero(keep)
    inds = jnp.stack([rows.astype(jnp.int32), cols.astype(jnp.int32)], axis=1)
    return inds, P[rows, cols]


# ---------------------------------------------------------------------------
# Pallas kernel 3: epipolar closest-point offsets (refine_matches hot path)
# ---------------------------------------------------------------------------
def _epipolar_refine_kernel(f_ref, pts_ref, off_ref):
    # f_ref: (9,) f32 in SMEM (row-major 3x3 F)
    # pts_ref: (8, M) f32 in VMEM; rows = x0, y0, x1, y1, <4 zero-pad rows>
    x0 = pts_ref[0:1, :]
    y0 = pts_ref[1:2, :]
    x1 = pts_ref[2:3, :]
    y1 = pts_ref[3:4, :]
    # lines_1 = (F @ [x0, y0, 1]^T)^T computed elementwise with scalar F
    a = f_ref[0] * x0 + f_ref[1] * y0 + f_ref[2]
    b = f_ref[3] * x0 + f_ref[4] * y0 + f_ref[5]
    c = f_ref[6] * x0 + f_ref[7] * y0 + f_ref[8]
    inv_den = 1.0 / (a * a + b * b + 1e-8)   # exact divide (matches the reference)
    off_ref[0:1, :] = (b * (b * x1 - a * y1) - a * c) * inv_den - x1
    off_ref[1:2, :] = (a * (a * y1 - b * x1) - b * c) * inv_den - y1


def epipolar_offsets_pallas(Fm, mkpts0, mkpts1):
    m = mkpts0.shape[0]
    m_pad = max(128, _round_up(max(m, 1), 128))   # lane-dense output
    pts = jnp.zeros((8, m_pad), jnp.float32)
    pts = pts.at[0, :m].set(mkpts0[:, 0].astype(jnp.float32))
    pts = pts.at[1, :m].set(mkpts0[:, 1].astype(jnp.float32))
    pts = pts.at[2, :m].set(mkpts1[:, 0].astype(jnp.float32))
    pts = pts.at[3, :m].set(mkpts1[:, 1].astype(jnp.float32))
    off = pl.pallas_call(
        _epipolar_refine_kernel,
        out_shape=jax.ShapeDtypeStruct((2, m_pad), jnp.float32),
        in_specs=[pl.BlockSpec(memory_space=pltpu.MemorySpace.SMEM),
                  pl.BlockSpec(memory_space=pltpu.MemorySpace.VMEM)],
        out_specs=pl.BlockSpec(memory_space=pltpu.MemorySpace.VMEM),
    )(Fm.reshape(9).astype(jnp.float32), pts)
    # pad lanes hold garbage offsets; they are sliced off here
    return off[0, :m], off[1, :m]


# ---------------------------------------------------------------------------
# DenseMatcher (JAX/Pallas port)
# ---------------------------------------------------------------------------
class DenseMatcherPallas:
    def __init__(self, inv_temperature=20, thr=0.01, row_tile=None,
                 xla_fallback_elems=128 * 128):
        self.inv_temperature = inv_temperature
        self.thr = thr
        self.row_tile = row_tile                 # optional override of the row tile
        self.xla_fallback_elems = xla_fallback_elems

    # --- dual softmax --------------------------------------------------------
    def dual_softmax(self, desc0, desc1, thr=None):
        if thr is None:
            thr = self.thr
        # Returns (inds, mconf); mconf == P[inds[:,0], inds[:,1]] of the reference.
        if desc0.shape[0] * desc1.shape[0] <= self.xla_fallback_elems:
            return _dual_softmax_xla(desc0, desc1, self.inv_temperature, thr)
        return dual_softmax_pallas(desc0, desc1, self.inv_temperature, thr,
                                   row_tile=self.row_tile)

    # --- fundamental matrix --------------------------------------------------
    def get_fundamental_matrix(self, kpts_0, kpts_1):
        # TODO(synk): poselib.estimate_fundamental (progressive-sampling RANSAC)
        # has no Pallas/JAX equivalent; deterministic normalized 8-point least
        # squares + Sampson-error inliers (max_epipolar_error=1) is used instead.
        def normalize(pts):
            mean = pts.mean(axis=0)
            dist = jnp.sqrt(((pts - mean) ** 2).sum(-1)).mean()
            s = jnp.sqrt(2.0) / (dist + 1e-8)
            T = jnp.array([[s, 0.0, -s * mean[0]],
                           [0.0, s, -s * mean[1]],
                           [0.0, 0.0, 1.0]], jnp.float32)
            return (pts - mean) * s, T

        p0n, T0 = normalize(kpts_0)
        p1n, T1 = normalize(kpts_1)
        x0, y0 = p0n[:, 0], p0n[:, 1]
        x1, y1 = p1n[:, 0], p1n[:, 1]
        A = jnp.stack([x1 * x0, x1 * y0, x1,
                       y1 * x0, y1 * y0, y1,
                       x0, y0, jnp.ones_like(x0)], axis=1)
        _, _, Vt = jnp.linalg.svd(A, full_matrices=False)
        F = Vt[-1].reshape(3, 3)
        U, S, Vt2 = jnp.linalg.svd(F)
        F = U @ jnp.diag(S.at[2].set(0.0)) @ Vt2
        F = T1.T @ F @ T0
        F = F / (jnp.linalg.norm(F) + 1e-12)

        ones = jnp.ones((kpts_0.shape[0], 1), jnp.float32)
        p0h = jnp.concatenate([kpts_0, ones], axis=1)
        p1h = jnp.concatenate([kpts_1, ones], axis=1)
        Fx0 = p0h @ F.T          # epipolar lines in image 1
        Ftx1 = p1h @ F
        num = (p1h * Fx0).sum(-1)
        denom = Fx0[:, 0] ** 2 + Fx0[:, 1] ** 2 + Ftx1[:, 0] ** 2 + Ftx1[:, 1] ** 2
        sampson_sq = num ** 2 / (denom + 1e-12)
        inliers = sampson_sq < 1.0 ** 2
        return F, inliers

    # --- refine_matches (Pallas offsets) -------------------------------------
    def refine_matches(self, mkpts_0, mkpts_1, mconf, Fm, err_thr=4):
        x_off, y_off = epipolar_offsets_pallas(Fm, mkpts_0, mkpts_1)
        keep = (jnp.abs(x_off) < err_thr) | (jnp.abs(y_off) < err_thr)
        idx = jnp.nonzero(keep)[0]
        x_off = x_off[idx]
        y_off = y_off[idx]
        mkpts_0 = mkpts_0[idx]
        mkpts_1 = mkpts_1[idx]
        refined_mkpts_1 = mkpts_1 + jnp.stack([x_off, y_off], axis=1)
        return mkpts_0, refined_mkpts_1, mconf[idx]

    # --- forward --------------------------------------------------------------
    def forward(self, info0, info1, thr=None, err_thr=4,
                min_num_inliers=30, anchor='mnn'):
        desc0 = info0['descriptors']
        desc1 = info1['descriptors']
        if anchor == 'mnn':
            inds, mconf = self.dual_softmax(desc0, desc1, thr=thr)
        elif anchor == 'lightglue':
            # TODO(synk): LightGlue branch needs a pretrained transformer matcher;
            # no clean Pallas equivalent here.
            raise NotImplementedError("lightglue anchor not supported in this port")
        else:
            raise ValueError(f"Unknown anchor type: {anchor}. Use 'mnn' or 'lightglue'.")

        mkpts_0 = info0['keypoints'][inds[:, 0]]
        mkpts_1 = info1['keypoints'][inds[:, 1]]
        Fm, inliers = self.get_fundamental_matrix(mkpts_0, mkpts_1)

        # TODO(synk): int() forces a host sync between the sparse and dense passes;
        # unavoidable because the downstream nonzero/gathers are dynamically shaped.
        if int(jnp.sum(inliers)) >= min_num_inliers:
            inds_dense, mconf_dense = self.dual_softmax(
                info0['descriptors_dense'], info1['descriptors_dense'], thr=thr)
            mkpts_0_dense = info0['keypoints_dense'][inds_dense[:, 0]]
            mkpts_1_dense = info1['keypoints_dense'][inds_dense[:, 1]]
            mkpts_0_dense, mkpts_1_dense, mconf_dense = self.refine_matches(
                mkpts_0_dense, mkpts_1_dense, mconf_dense, Fm, err_thr=err_thr)
            mkpts_0 = jnp.concatenate([mkpts_0[inliers], mkpts_0_dense], axis=0)
            mkpts_1 = jnp.concatenate([mkpts_1[inliers], mkpts_1_dense], axis=0)
            mconf = jnp.concatenate([mconf[inliers], mconf_dense], axis=0)
        return mkpts_0, mkpts_1, mconf


# ---------------------------------------------------------------------------
# Deterministic synthetic two-view data
# ---------------------------------------------------------------------------
def _project(X, K, R, t):
    Xc = X @ R.T + t
    uv = Xc @ K.T
    return uv[:, :2] / uv[:, 2:3]


def _make_view_pair(key, n_pts, d_desc, K, R, t, noise=0.01):
    k1, k2, k3 = jax.random.split(key, 3)
    X = jax.random.uniform(k1, (n_pts, 3), jnp.float32,
                           minval=jnp.array([-2.0, -2.0, 4.0]),
                           maxval=jnp.array([2.0, 2.0, 8.0]))
    kpts0 = _project(X, K, jnp.eye(3, dtype=jnp.float32), jnp.zeros(3, jnp.float32))
    kpts1 = _project(X, K, R, t)
    base = jax.random.normal(k2, (n_pts, d_desc), jnp.float32)
    base = base / jnp.linalg.norm(base, axis=1, keepdims=True)
    n0, n1 = jax.random.split(k3)
    d0 = base + noise * jax.random.normal(n0, base.shape, jnp.float32)
    d1 = base + noise * jax.random.normal(n1, base.shape, jnp.float32)
    d0 = d0 / jnp.linalg.norm(d0, axis=1, keepdims=True)
    d1 = d1 / jnp.linalg.norm(d1, axis=1, keepdims=True)
    return kpts0, kpts1, d0, d1


if __name__ == "__main__":
    key = jax.random.PRNGKey(0)
    k_sparse, k_dense = jax.random.split(key)

    N_SPARSE, N_DENSE, D_DESC = 64, 512, 32
    K = jnp.array([[100.0, 0.0, 64.0],
                   [0.0, 100.0, 48.0],
                   [0.0, 0.0, 1.0]], jnp.float32)
    ang = 0.05
    R = jnp.array([[jnp.cos(ang), 0.0, jnp.sin(ang)],
                   [0.0, 1.0, 0.0],
                   [-jnp.sin(ang), 0.0, jnp.cos(ang)]], jnp.float32)
    t = jnp.array([0.5, 0.1, 0.0], jnp.float32)

    kp0, kp1, de0, de1 = _make_view_pair(k_sparse, N_SPARSE, D_DESC, K, R, t)
    kp0d, kp1d, de0d, de1d = _make_view_pair(k_dense, N_DENSE, D_DESC, K, R, t)

    info0 = {'keypoints': kp0, 'descriptors': de0,
             'keypoints_dense': kp0d, 'descriptors_dense': de0d}
    info1 = {'keypoints': kp1, 'descriptors': de1,
             'keypoints_dense': kp1d, 'descriptors_dense': de1d}

    # row_tile=128 so the dense pass (N0=512) exercises the multi-tile grid,
    # the two-half parallel split and the online cross-tile column
    # accumulation / argmax path.  The sparse pass (64x64) takes the XLA
    # fallback by design.
    matcher = DenseMatcherPallas(inv_temperature=20, thr=0.01, row_tile=128)
    mkpts_0, mkpts_1, mconf = matcher.forward(
        info0, info1, err_thr=4, min_num_inliers=8, anchor='mnn')

    jax.block_until_ready((mkpts_0, mkpts_1, mconf))
    assert mkpts_0.shape == mkpts_1.shape and mkpts_0.shape[0] == mconf.shape[0]
    # the dense (Pallas) branch must have run and contributed matches
    assert mkpts_0.shape[0] > N_SPARSE
    print("KERNEL_OK")
</pallas_src>

<mosaic_0001>
module attributes {stable_mosaic.version = 11 : i64} {
  func.func @_dual_softmax_stats_kernel(%arg0: i32, %arg1: i32, %arg2: memref<128x128xbf16, #tpu.memory_space<vmem>>, %arg3: memref<512x128xbf16, #tpu.memory_space<vmem>>, %arg4: memref<1x1x512xf32, #tpu.memory_space<vmem>>, %arg5: memref<1x1x512xf32, #tpu.memory_space<vmem>>, %arg6: memref<1x1x512xi32, #tpu.memory_space<vmem>>, %arg7: memref<128x1xf32, #tpu.memory_space<vmem>>, %arg8: memref<1x512xf32, #tpu.memory_space<vmem>>, %arg9: memref<1x512xf32, #tpu.memory_space<vmem>>) attributes {dimension_semantics = [#tpu.dimension_semantics<parallel>, #tpu.dimension_semantics<arbitrary>], iteration_bounds = array<i64: 2, 2>, scalar_prefetch = 0 : i64, scratch_operands = 2 : i64, tpu.core_type = #tpu.core_type<tc>, window_params = [{transform_indices = @transform_0, window_bounds = array<i64: 128, 128>}, {pipeline_mode = #tpu.pipeline_mode<synchronous>, transform_indices = @transform_1, window_bounds = array<i64: 512, 128>}, {transform_indices = @transform_2, window_bounds = array<i64: 1, 1, 512>}, {transform_indices = @transform_3, window_bounds = array<i64: 1, 1, 512>}, {transform_indices = @transform_4, window_bounds = array<i64: 1, 1, 512>}, {transform_indices = @transform_5, window_bounds = array<i64: 128, 1>}]} {
    %c2_i32 = arith.constant 2 : i32
    %0 = arith.muli %arg0, %c2_i32 : i32
    %1 = arith.addi %0, %arg1 : i32
    %c0 = arith.constant 0 : index
    %c0_0 = arith.constant 0 : index
    %2 = vector.load %arg2[%c0, %c0_0] : memref<128x128xbf16, #tpu.memory_space<vmem>>, vector<128x128xbf16>
    %c0_1 = arith.constant 0 : index
    %c0_2 = arith.constant 0 : index
    %3 = vector.load %arg3[%c0_1, %c0_2] : memref<512x128xbf16, #tpu.memory_space<vmem>>, vector<512x128xbf16>
    %cst = arith.constant dense<0.000000e+00> : vector<128x512xf32>
    %4 = tpu.matmul %2, %3, %cst {dimension_numbers = #tpu.dot_dimension_numbers<[1], [1], [0], [0], [0, 0, 1, 0], [], []>} : vector<128x128xbf16>, vector<512x128xbf16>, vector<128x512xf32> -> vector<128x512xf32>
    %5 = tpu.iota {dimensions = array<i32: 0>} : vector<128x1xi32>
    %c128_i32 = arith.constant 128 : i32
    %6 = arith.muli %1, %c128_i32 : i32
    %7 = vector.broadcast %6 : i32 to vector<128x1xi32>
    %8 = arith.addi %5, %7 : vector<128x1xi32>
    %c512_i32 = arith.constant 512 : i32
    %9 = vector.broadcast %c512_i32 : i32 to vector<128x1xi32>
    %10 = arith.cmpi slt, %8, %9 : vector<128x1xi32>
    %cst_3 = arith.constant dense<0xFF800000> : vector<128xf32>
    %11 = vector.multi_reduction <maximumf>, %4, %cst_3 [1] : vector<128x512xf32> to vector<128xf32>
    %12 = vector.shape_cast %11 : vector<128xf32> to vector<128x1xf32>
    %13 = vector.broadcast %12 : vector<128x1xf32> to vector<128x512xf32>
    %14 = arith.subf %4, %13 : vector<128x512xf32>
    %15 = math.exp %14 : vector<128x512xf32>
    %cst_4 = arith.constant dense<0.000000e+00> : vector<128xf32>
    %16 = vector.multi_reduction <add>, %15, %cst_4 [1] : vector<128x512xf32> to vector<128xf32>
    %17 = vector.shape_cast %16 : vector<128xf32> to vector<128x1xf32>
    %18 = math.log %17 : vector<128x1xf32>
    %19 = arith.addf %12, %18 : vector<128x1xf32>
    %c0_5 = arith.constant 0 : index
    %c0_6 = arith.constant 0 : index
    %20 = vector.load %arg7[%c0_5, %c0_6] : memref<128x1xf32, #tpu.memory_space<vmem>>, vector<128x1xf32>
    tpu.vector_store %arg7[%c0_5, %c0_6], %19 {strides = array<i32>} : memref<128x1xf32, #tpu.memory_space<vmem>>, vector<128x1xf32>,
    %c0_i32 = arith.constant 0 : i32
    %21 = arith.cmpi eq, %arg1, %c0_i32 : i32
    %22 = arith.extui %21 : i1 to i32
    %c0_i32_7 = arith.constant 0 : i32
    %23 = arith.cmpi ne, %22, %c0_i32_7 : i32
    scf.if %23 {
      %cst_41 = arith.constant -1.000000e+30 : f32
      %90 = vector.broadcast %cst_41 : f32 to vector<1x512xf32>
      %c0_42 = arith.constant 0 : index
      %c0_43 = arith.constant 0 : index
      %91 = vector.load %arg8[%c0_42, %c0_43] : memref<1x512xf32, #tpu.memory_space<vmem>>, vector<1x512xf32>
      tpu.vector_store %arg8[%c0_42, %c0_43], %90 {strides = array<i32>} : memref<1x512xf32, #tpu.memory_space<vmem>>, vector<1x512xf32>,
      %cst_44 = arith.constant 0.000000e+00 : f32
      %92 = vector.broadcast %cst_44 : f32 to vector<1x512xf32>
      %c0_45 = arith.constant 0 : index
      %c0_46 = arith.constant 0 : index
      %93 = vector.load %arg9[%c0_45, %c0_46] : memref<1x512xf32, #tpu.memory_space<vmem>>, vector<1x512xf32>
      tpu.vector_store %arg9[%c0_45, %c0_46], %92 {strides = array<i32>} : memref<1x512xf32, #tpu.memory_space<vmem>>, vector<1x512xf32>,
      %cst_47 = arith.constant -1.000000e+30 : f32
      %94 = vector.broadcast %cst_47 : f32 to vector<1x512xf32>
      %c0_48 = arith.constant 0 : index
      %c0_49 = arith.constant 0 : index
      %c0_50 = arith.constant 0 : index
      %95 = vector.load %arg5[%c0_48, %c0_49, %c0_50] : memref<1x1x512xf32, #tpu.memory_space<vmem>>, vector<1x1x512xf32>
      %96 = vector.shape_cast %95 : vector<1x1x512xf32> to vector<1x512xf32>
      %97 = vector.shape_cast %94 : vector<1x512xf32> to vector<1x1x512xf32>
      tpu.vector_store %arg5[%c0_48, %c0_49, %c0_50], %97 {strides = array<i32>} : memref<1x1x512xf32, #tpu.memory_space<vmem>>, vector<1x1x512xf32>,
      %c0_i32_51 = arith.constant 0 : i32
      %98 = vector.broadcast %c0_i32_51 : i32 to vector<1x512xi32>
      %c0_52 = arith.constant 0 : index
      %c0_53 = arith.constant 0 : index
      %c0_54 = arith.constant 0 : index
      %99 = vector.load %arg6[%c0_52, %c0_53, %c0_54] : memref<1x1x512xi32, #tpu.memory_space<vmem>>, vector<1x1x512xi32>
      %100 = vector.shape_cast %99 : vector<1x1x512xi32> to vector<1x512xi32>
      %101 = vector.shape_cast %98 : vector<1x512xi32> to vector<1x1x512xi32>
      tpu.vector_store %arg6[%c0_52, %c0_53, %c0_54], %101 {strides = array<i32>} : memref<1x1x512xi32, #tpu.memory_space<vmem>>, vector<1x1x512xi32>,
    } else {
    }
    %cst_8 = arith.constant dense<0xFF800000> : vector<512xf32>
    %24 = vector.multi_reduction <maximumf>, %4, %cst_8 [0] : vector<128x512xf32> to vector<512xf32>
    %25 = vector.shape_cast %24 : vector<512xf32> to vector<1x512xf32>
    %c0_9 = arith.constant 0 : index
    %c0_10 = arith.constant 0 : index
    %26 = vector.load %arg8[%c0_9, %c0_10] : memref<1x512xf32, #tpu.memory_space<vmem>>, vector<1x512xf32>
    %27 = arith.maximumf %26, %25 : vector<1x512xf32>
    %28 = vector.shape_cast %12 : vector<128x1xf32> to vector<1x128x1xf32>
    %cst_11 = arith.constant dense<0xFF800000> : vector<1xf32>
    %29 = vector.multi_reduction <maximumf>, %28, %cst_11 [1, 2] : vector<1x128x1xf32> to vector<1xf32>
    %30 = vector.shape_cast %29 : vector<1xf32> to vector<1x1x1xf32>
    %31 = vector.extract %30[0, 0, 0] : f32 from vector<1x1x1xf32>
    %32 = vector.broadcast %31 : f32 to vector<128x1xf32>
    %33 = arith.subf %12, %32 : vector<128x1xf32>
    %34 = math.exp %33 : vector<128x1xf32>
    %cst_12 = arith.constant 0.000000e+00 : f32
    %35 = vector.broadcast %cst_12 : f32 to vector<128x1xf32>
    %36 = arith.select %10, %34, %35 : vector<128x1xi1>, vector<128x1xf32>
    %37 = vector.broadcast %36 : vector<128x1xf32> to vector<128x512xf32>
    %38 = arith.mulf %15, %37 : vector<128x512xf32>
    %cst_13 = arith.constant dense<0.000000e+00> : vector<512xf32>
    %39 = vector.multi_reduction <add>, %38, %cst_13 [0] : vector<128x512xf32> to vector<512xf32>
    %40 = vector.shape_cast %39 : vector<512xf32> to vector<1x512xf32>
    %41 = vector.broadcast %31 : f32 to vector<1x512xf32>
    %42 = arith.subf %41, %27 : vector<1x512xf32>
    %cst_14 = arith.constant 8.000000e+01 : f32
    %43 = vector.broadcast %cst_14 : f32 to vector<1x512xf32>
    %44 = arith.minimumf %42, %43 : vector<1x512xf32>
    %45 = math.exp %44 : vector<1x512xf32>
    %c0_15 = arith.constant 0 : index
    %c0_16 = arith.constant 0 : index
    %46 = vector.load %arg9[%c0_15, %c0_16] : memref<1x512xf32, #tpu.memory_space<vmem>>, vector<1x512xf32>
    %47 = arith.subf %26, %27 : vector<1x512xf32>
    %48 = math.exp %47 : vector<1x512xf32>
    %49 = arith.mulf %46, %48 : vector<1x512xf32>
    %50 = arith.mulf %40, %45 : vector<1x512xf32>
    %51 = arith.addf %49, %50 : vector<1x512xf32>
    %c0_17 = arith.constant 0 : index
    %c0_18 = arith.constant 0 : index
    %52 = vector.load %arg9[%c0_17, %c0_18] : memref<1x512xf32, #tpu.memory_space<vmem>>, vector<1x512xf32>
    tpu.vector_store %arg9[%c0_17, %c0_18], %51 {strides = array<i32>} : memref<1x512xf32, #tpu.memory_space<vmem>>, vector<1x512xf32>,
    %c0_19 = arith.constant 0 : index
    %c0_20 = arith.constant 0 : index
    %53 = vector.load %arg8[%c0_19, %c0_20] : memref<1x512xf32, #tpu.memory_space<vmem>>, vector<1x512xf32>
    tpu.vector_store %arg8[%c0_19, %c0_20], %27 {strides = array<i32>} : memref<1x512xf32, #tpu.memory_space<vmem>>, vector<1x512xf32>,
    %cst_21 = arith.constant 5.000000e-01 : f32
    %54 = vector.broadcast %cst_21 : f32 to vector<128x1xf32>
    %55 = arith.mulf %54, %19 : vector<128x1xf32>
    %56 = vector.broadcast %55 : vector<128x1xf32> to vector<128x512xf32>
    %57 = arith.subf %4, %56 : vector<128x512xf32>
    %cst_22 = arith.constant -1.000000e+30 : f32
    %58 = vector.shape_cast %10 : vector<128x1xi1> to vector<128x1xi1>
    %59 = vector.broadcast %58 : vector<128x1xi1> to vector<128x512xi1>
    %60 = vector.broadcast %cst_22 : f32 to vector<128x512xf32>
    %61 = arith.select %59, %57, %60 : vector<128x512xi1>, vector<128x512xf32>
    %cst_23 = arith.constant dense<0xFF800000> : vector<512xf32>
    %62 = vector.multi_reduction <maximumf>, %61, %cst_23 [0] : vector<128x512xf32> to vector<512xf32>
    %63 = vector.shape_cast %62 : vector<512xf32> to vector<1x512xf32>
    %64 = vector.broadcast %63 : vector<1x512xf32> to vector<128x512xf32>
    %65 = arith.cmpf oeq, %61, %64 : vector<128x512xf32>
    %c1073741824_i32 = arith.constant 1073741824 : i32
    %66 = vector.shape_cast %8 : vector<128x1xi32> to vector<128x1xi32>
    %67 = vector.broadcast %66 : vector<128x1xi32> to vector<128x512xi32>
    %68 = vector.broadcast %c1073741824_i32 : i32 to vector<128x512xi32>
    %69 = arith.select %65, %67, %68 : vector<128x512xi1>, vector<128x512xi32>
    %cst_24 = arith.constant dense<2147483647> : vector<512xi32>
    %70 = vector.multi_reduction <minsi>, %69, %cst_24 [0] : vector<128x512xi32> to vector<512xi32>
    %71 = vector.shape_cast %70 : vector<512xi32> to vector<1x512xi32>
    %c0_25 = arith.constant 0 : index
    %c0_26 = arith.constant 0 : index
    %c0_27 = arith.constant 0 : index
    %72 = vector.load %arg5[%c0_25, %c0_26, %c0_27] : memref<1x1x512xf32, #tpu.memory_space<vmem>>, vector<1x1x512xf32>
    %73 = vector.shape_cast %72 : vector<1x1x512xf32> to vector<1x512xf32>
    %74 = arith.cmpf ogt, %63, %73 : vector<1x512xf32>
    %c0_28 = arith.constant 0 : index
    %c0_29 = arith.constant 0 : index
    %c0_30 = arith.constant 0 : index
    %75 = vector.load %arg5[%c0_28, %c0_29, %c0_30] : memref<1x1x512xf32, #tpu.memory_space<vmem>>, vector<1x1x512xf32>
    %76 = vector.shape_cast %75 : vector<1x1x512xf32> to vector<1x512xf32>
    %77 = arith.select %74, %63, %76 : vector<1x512xi1>, vector<1x512xf32>
    %c0_31 = arith.constant 0 : index
    %c0_32 = arith.constant 0 : index
    %c0_33 = arith.constant 0 : index
    %78 = vector.load %arg5[%c0_31, %c0_32, %c0_33] : memref<1x1x512xf32, #tpu.memory_space<vmem>>, vector<1x1x512xf32>
    %79 = vector.shape_cast %78 : vector<1x1x512xf32> to vector<1x512xf32>
    %80 = vector.shape_cast %77 : vector<1x512xf32> to vector<1x1x512xf32>
    tpu.vector_store %arg5[%c0_31, %c0_32, %c0_33], %80 {strides = array<i32>} : memref<1x1x512xf32, #tpu.memory_space<vmem>>, vector<1x1x512xf32>,
    %c0_34 = arith.constant 0 : index
    %c0_35 = arith.constant 0 : index
    %c0_36 = arith.constant 0 : index
    %81 = vector.load %arg6[%c0_34, %c0_35, %c0_36] : memref<1x1x512xi32, #tpu.memory_space<vmem>>, vector<1x1x512xi32>
    %82 = vector.shape_cast %81 : vector<1x1x512xi32> to vector<1x512xi32>
    %83 = arith.select %74, %71, %82 : vector<1x512xi1>, vector<1x512xi32>
    %c0_37 = arith.constant 0 : index
    %c0_38 = arith.constant 0 : index
    %c0_39 = arith.constant 0 : index
    %84 = vector.load %arg6[%c0_37, %c0_38, %c0_39] : memref<1x1x512xi32, #tpu.memory_space<vmem>>, vector<1x1x512xi32>
    %85 = vector.shape_cast %84 : vector<1x1x512xi32> to vector<1x512xi32>
    %86 = vector.shape_cast %83 : vector<1x512xi32> to vector<1x1x512xi32>
    tpu.vector_store %arg6[%c0_37, %c0_38, %c0_39], %86 {strides = array<i32>} : memref<1x1x512xi32, #tpu.memory_space<vmem>>, vector<1x1x512xi32>,
    %c1_i32 = arith.constant 1 : i32
    %87 = arith.cmpi eq, %arg1, %c1_i32 : i32
    %88 = arith.extui %87 : i1 to i32
    %c0_i32_40 = arith.constant 0 : i32
    %89 = arith.cmpi ne, %88, %c0_i32_40 : i32
    scf.if %89 {
      %c0_41 = arith.constant 0 : index
      %c0_42 = arith.constant 0 : index
      %90 = vector.load %arg8[%c0_41, %c0_42] : memref<1x512xf32, #tpu.memory_space<vmem>>, vector<1x512xf32>
      %c0_43 = arith.constant 0 : index
      %c0_44 = arith.constant 0 : index
      %91 = vector.load %arg9[%c0_43, %c0_44] : memref<1x512xf32, #tpu.memory_space<vmem>>, vector<1x512xf32>
      %92 = math.log %91 : vector<1x512xf32>
      %93 = arith.addf %90, %92 : vector<1x512xf32>
      %c0_45 = arith.constant 0 : index
      %c0_46 = arith.constant 0 : index
      %c0_47 = arith.constant 0 : index
      %94 = vector.load %arg4[%c0_45, %c0_46, %c0_47] : memref<1x1x512xf32, #tpu.memory_space<vmem>>, vector<1x1x512xf32>
      %95 = vector.shape_cast %94 : vector<1x1x512xf32> to vector<1x512xf32>
      %96 = vector.shape_cast %93 : vector<1x512xf32> to vector<1x1x512xf32>
      tpu.vector_store %arg4[%c0_45, %c0_46, %c0_47], %96 {strides = array<i32>} : memref<1x1x512xf32, #tpu.memory_space<vmem>>, vector<1x1x512xf32>,
    } else {
    }
    return
  }
  func.func @transform_0(%arg0: i32, %arg1: i32) -> (i32, i32) {
    %c2_i32 = arith.constant 2 : i32
    %0 = arith.muli %arg0, %c2_i32 : i32
    %1 = arith.addi %0, %arg1 : i32
    %c0_i32 = arith.constant 0 : i32
    %c0_i32_0 = arith.constant 0 : i32
    return %1, %c0_i32 : i32, i32
  }
  func.func @transform_1(%arg0: i32, %arg1: i32) -> (i32, i32) {
    %c0_i32 = arith.constant 0 : i32
    %c0_i32_0 = arith.constant 0 : i32
    %c0_i32_1 = arith.constant 0 : i32
    return %c0_i32, %c0_i32_0 : i32, i32
  }
  func.func @transform_2(%arg0: i32, %arg1: i32) -> (i32, i32, i32) {
    %c0_i32 = arith.constant 0 : i32
    %c0_i32_0 = arith.constant 0 : i32
    %c0_i32_1 = arith.constant 0 : i32
    return %arg0, %c0_i32, %c0_i32_0 : i32, i32, i32
  }
  func.func @transform_3(%arg0: i32, %arg1: i32) -> (i32, i32, i32) {
    %c0_i32 = arith.constant 0 : i32
    %c0_i32_0 = arith.constant 0 : i32
    %c0_i32_1 = arith.constant 0 : i32
    return %arg0, %c0_i32, %c0_i32_0 : i32, i32, i32
  }
  func.func @transform_4(%arg0: i32, %arg1: i32) -> (i32, i32, i32) {
    %c0_i32 = arith.constant 0 : i32
    %c0_i32_0 = arith.constant 0 : i32
    %c0_i32_1 = arith.constant 0 : i32
    return %arg0, %c0_i32, %c0_i32_0 : i32, i32, i32
  }
  func.func @transform_5(%arg0: i32, %arg1: i32) -> (i32, i32) {
    %c2_i32 = arith.constant 2 : i32
    %0 = arith.muli %arg0, %c2_i32 : i32
    %1 = arith.addi %0, %arg1 : i32
    %c0_i32 = arith.constant 0 : i32
    %c0_i32_0 = arith.constant 0 : i32
    return %1, %c0_i32 : i32, i32
  }
}

</mosaic_0001>

<llo_original>
// kernel: tpu_custom_call.1
$region0: #{tpu_custom_call.1}
  #allocation0 [shape = 'u32[]', space=smem, size = 0x4, offset = 0x4, fixed_abs, tag = 'smem constant byte address 0x4 - core index']
  #allocation1 [shape = 'u32[144,128]{1,0:T(1,128)}', space=vmem, size = 0x12000, scoped, tag = 'internal scratch']
  #allocation2 [shape = 'f32[1,512]{1,0:T(1,128)}', space=vmem, size = 0x800, scoped, tag = 'scratch operand']
  #allocation3 [shape = 'f32[1,512]{1,0:T(1,128)}', space=vmem, size = 0x800, scoped, tag = 'scratch operand']
  %s0 = inlined_call_operand.hbm [shape: bf16[512,128], index: 0, kind: input, shape index: {}]
  %s1 = inlined_call_operand.hbm [shape: bf16[512,128], index: 1, kind: input, shape index: {}]
  %s2 = inlined_call_operand.hbm [shape: f32[2,1,512], index: 2, kind: output, shape index: {0}]
  %s3 = inlined_call_operand.hbm [shape: f32[2,1,512], index: 3, kind: output, shape index: {1}]
  %s4 = inlined_call_operand.hbm [shape: s32[2,1,512], index: 4, kind: output, shape index: {2}]
  %s5 = inlined_call_operand.vmem [shape: f32[512,1], index: 5, kind: output, shape index: {3}]
  %6 = xla_tuple %s2, %s3, %s4, %s5
  %s7 = sld [smem:[#allocation0]]
  $region81: #{tpu_custom_call.1} parent=0
    _
  %s9 = ssub.s32 1, %s7
  %s10 = scalar_select 0, %s9, %s7
  $region1: #{tpu_custom_call.1} parent=0
    #allocation4 [shape = 'u8[65536]{0}', space=vmem, size = 0x10000, scoped, tag = 'input window, operand 0']
    #allocation5 [shape = 's32[2]{0}', space=sflag, size = 0x8, scoped, tag = 'scoped memory for tpu_custom_call.1']
    #allocation6 [shape = 's32[2]{0}', space=sflag, size = 0x8, scoped, tag = 'scoped memory for tpu_custom_call.1']
    #allocation7 [shape = 'u8[131072]{0}', space=vmem, size = 0x20000, scoped, tag = 'input window, operand 1, single buffered']
    #allocation8 [shape = 's32[1]{0}', space=sflag, size = 0x4, scoped, tag = 'scoped memory for tpu_custom_call.1']
    #allocation9 [shape = 'u8[4096]{0}', space=vmem, size = 0x1000, scoped, tag = 'output window, operand 0']
    #allocation10 [shape = 'u8[4096]{0}', space=vmem, size = 0x1000, scoped, tag = 'output window, operand 1']
    #allocation11 [shape = 's32[2]{0}', space=sflag, size = 0x8, scoped, tag = 'scoped memory for tpu_custom_call.1']
    #allocation12 [shape = 'u8[4096]{0}', space=vmem, size = 0x1000, scoped, tag = 'output window, operand 2']
    %11 = vsyncpa [#allocation5], 0
    %s12 = scalar_lea.sflag [#allocation5], 1
    %13 = vsyncpa %s12, 0
    %14 = vsyncpa [#allocation8], 0
    %15 = vsyncpa [#allocation6], 0
    %s16 = scalar_lea.sflag [#allocation6], 1
    %17 = vsyncpa %s16, 0
    %18 = vsyncpa [#allocation11], 0
    %s19 = scalar_lea.sflag [#allocation11], 1
    %20 = vsyncpa %s19, 0
    loop: start=0, step=1, limit=6
    $region2: #{tpu_custom_call.1} parent=1 // loop_pre_header
      _
    $region3: #{tpu_custom_call.1} parent=1 // loop_header
      %s22 = sphi 0, %s26
      %p23 = scmp.ge.s32.totalorder %s22, 6
      %s29 = sphi 0, %s41
      %s30 = sphi 0, %s37
      %s31 = sphi 0, %s29
      %s32 = sphi 0, %s30
      %s33 = sphi 0, %s31
      %s34 = sphi 0, %s32
      %s48 = sphi 0, %s50
      %s51 = sphi 0, %s48
      %s52 = sphi 0, %s51
      %s68 = sphi 0, %s52
      %s72 = sphi 0, %s72
      %s74 = sphi 0, %s72
      %s75 = sphi 0, %s74
      %s89 = sphi 0, %s75
      %s95 = sphi 0, %s97
      %s98 = sphi 0, %s95
      %s99 = sphi 0, %s98
      %s115 = sphi 0, %s99
      %s121 = sphi 0, %s123
      %s124 = sphi 0, %s121
      %s125 = sphi 0, %s124
      %s141 = sphi 0, %s125
      %s147 = sphi 0, %s149
      %s150 = sphi 0, %s147
      %s151 = sphi 0, %s150
      %s167 = sphi 0, %s151
      %s177 = sphi 0, %s179
      %s180 = sphi 0, %s177
      %s181 = sphi 0, %s180
      %s197 = sphi 0, %s181
    $region4: #{tpu_custom_call.1} parent=1 // loop_header_branch
      %25 = sbr.rel (%p23) target = $region8
    $region5: #{tpu_custom_call.1} parent=1 // loop_body
      %s27 = ssub.s32 %s22, 1
      %s28 = ssub.s32 %s22, 2
      %s35 = sadd.s32 1, %s30
      %p36 = scmp.ge.s32.totalorder %s35, 2
      %s37 = scalar_select %p36, 0, %s35
      %s38 = sadd.s32 1, %s29
      %s39 = scalar_select %p36, %s38, %s29
      %p40 = scmp.ge.s32.totalorder %s39, 2
      %s41 = scalar_select %p40, 0, %s39
      %s42 = smul.u32 %s29, 2
      %s43 = sadd.s32 %s42, %s30
      %s44 = smul.u32 %s41, 2
      %s45 = sadd.s32 %s44, %s37
      %s46 = ssub.s32 %s43, %s45
      %p47 = scmp.eq.s32.totalorder %s46, 0
      %s49 = sadd.s32 %s48, 1
      %s50 = scalar_select %p47, %s48, %s49
      %p53 = pneg %p47
      %p54 = scmp.eq.s32.totalorder %s22, 3
      %p55 = por %p53, %p54
      %p56 = scmp.ne.s32.totalorder %s48, %s51
      %p57 = scmp.eq.s32.totalorder %s22, 0
      %p58 = por %p56, %p57
      %p59 = scmp.ne.s32.totalorder %s48, %s51
      %p60 = scmp.eq.s32.totalorder %s27, 3
      %p61 = por %p59, %p60
      %p62 = scmp.ne.s32.totalorder %s51, %s52
      %p63 = scmp.eq.s32.totalorder %s27, 0
      %p64 = por %p62, %p63
      %p65 = scmp.ne.s32.totalorder %s51, %s52
      %p66 = scmp.eq.s32.totalorder %s28, 3
      %p67 = por %p65, %p66
      %p69 = scmp.ne.s32.totalorder %s52, %s68
      %p70 = scmp.eq.s32.totalorder %s28, 0
      %p71 = por %p69, %p70
      %s73 = sadd.s32 %s72, 1
      %p76 = scmp.eq.s32.totalorder %s22, 3
      %p77 = scmp.ne.s32.totalorder %s72, %s74
      %p78 = scmp.eq.s32.totalorder %s22, 0
      %p79 = por %p77, %p78
      %p80 = scmp.ne.s32.totalorder %s72, %s74
      %p81 = scmp.eq.s32.totalorder %s27, 3
      %p82 = por %p80, %p81
      %p83 = scmp.ne.s32.totalorder %s74, %s75
      %p84 = scmp.eq.s32.totalorder %s27, 0
      %p85 = por %p83, %p84
      %p86 = scmp.ne.s32.totalorder %s74, %s75
      %p87 = scmp.eq.s32.totalorder %s28, 3
      %p88 = por %p86, %p87
      %p90 = scmp.ne.s32.totalorder %s75, %s89
      %p91 = scmp.eq.s32.totalorder %s28, 0
      %p92 = por %p90, %p91
      %s93 = ssub.s32 %s29, %s41
      %p94 = scmp.eq.s32.totalorder %s93, 0
      %s96 = sadd.s32 %s95, 1
      %s97 = scalar_select %p94, %s95, %s96
      %p100 = pneg %p94
      %p101 = scmp.eq.s32.totalorder %s22, 3
      %p102 = por %p100, %p101
      %p103 = scmp.ne.s32.totalorder %s95, %s98
      %p104 = scmp.eq.s32.totalorder %s22, 0
      %p105 = por %p103, %p104
      %p106 = scmp.ne.s32.totalorder %s95, %s98
      %p107 = scmp.eq.s32.totalorder %s27, 3
      %p108 = por %p106, %p107
      %p109 = scmp.ne.s32.totalorder %s98, %s99
      %p110 = scmp.eq.s32.totalorder %s27, 0
      %p111 = por %p109, %p110
      %p112 = scmp.ne.s32.totalorder %s98, %s99
      %p113 = scmp.eq.s32.totalorder %s28, 3
      %p114 = por %p112, %p113
      %p116 = scmp.ne.s32.totalorder %s99, %s115
      %p117 = scmp.eq.s32.totalorder %s28, 0
      %p118 = por %p116, %p117
      %s119 = ssub.s32 %s29, %s41
      %p120 = scmp.eq.s32.totalorder %s119, 0
      %s122 = sadd.s32 %s121, 1
      %s123 = scalar_select %p120, %s121, %s122
      %p126 = pneg %p120
      %p127 = scmp.eq.s32.totalorder %s22, 3
      %p128 = por %p126, %p127
      %p129 = scmp.ne.s32.totalorder %s121, %s124
      %p130 = scmp.eq.s32.totalorder %s22, 0
      %p131 = por %p129, %p130
      %p132 = scmp.ne.s32.totalorder %s121, %s124
      %p133 = scmp.eq.s32.totalorder %s27, 3
      %p134 = por %p132, %p133
      %p135 = scmp.ne.s32.totalorder %s124, %s125
      %p136 = scmp.eq.s32.totalorder %s27, 0
      %p137 = por %p135, %p136
      %p138 = scmp.ne.s32.totalorder %s124, %s125
      %p139 = scmp.eq.s32.totalorder %s28, 3
      %p140 = por %p138, %p139
      %p142 = scmp.ne.s32.totalorder %s125, %s141
      %p143 = scmp.eq.s32.totalorder %s28, 0
      %p144 = por %p142, %p143
      %s145 = ssub.s32 %s29, %s41
      %p146 = scmp.eq.s32.totalorder %s145, 0
      %s148 = sadd.s32 %s147, 1
      %s149 = scalar_select %p146, %s147, %s148
      %p152 = pneg %p146
      %p153 = scmp.eq.s32.totalorder %s22, 3
      %p154 = por %p152, %p153
      %p155 = scmp.ne.s32.totalorder %s147, %s150
      %p156 = scmp.eq.s32.totalorder %s22, 0
      %p157 = por %p155, %p156
      %p158 = scmp.ne.s32.totalorder %s147, %s150
      %p159 = scmp.eq.s32.totalorder %s27, 3
      %p160 = por %p158, %p159
      %p161 = scmp.ne.s32.totalorder %s150, %s151
      %p162 = scmp.eq.s32.totalorder %s27, 0
      %p163 = por %p161, %p162
      %p164 = scmp.ne.s32.totalorder %s150, %s151
      %p165 = scmp.eq.s32.totalorder %s28, 3
      %p166 = por %p164, %p165
      %p168 = scmp.ne.s32.totalorder %s151, %s167
      %p169 = scmp.eq.s32.totalorder %s28, 0
      %p170 = por %p168, %p169
      %s171 = smul.u32 %s29, 2
      %s172 = sadd.s32 %s171, %s30
      %s173 = smul.u32 %s41, 2
      %s174 = sadd.s32 %s173, %s37
      %s175 = ssub.s32 %s172, %s174
      %p176 = scmp.eq.s32.totalorder %s175, 0
      %s178 = sadd.s32 %s177, 1
      %s179 = scalar_select %p176, %s177, %s178
      %p182 = pneg %p176
      %p183 = scmp.eq.s32.totalorder %s22, 3
      %p184 = por %p182, %p183
      %p185 = scmp.ne.s32.totalorder %s177, %s180
      %p186 = scmp.eq.s32.totalorder %s22, 0
      %p187 = por %p185, %p186
      %p188 = scmp.ne.s32.totalorder %s177, %s180
      %p189 = scmp.eq.s32.totalorder %s27, 3
      %p190 = por %p188, %p189
      %p191 = scmp.ne.s32.totalorder %s180, %s181
      %p192 = scmp.eq.s32.totalorder %s27, 0
      %p193 = por %p191, %p192
      %p194 = scmp.ne.s32.totalorder %s180, %s181
      %p195 = scmp.eq.s32.totalorder %s28, 3
      %p196 = por %p194, %p195
      %p198 = scmp.ne.s32.totalorder %s181, %s197
      %p199 = scmp.eq.s32.totalorder %s28, 0
      %p200 = por %p198, %p199
      %p201 = scmp.le.s32.totalorder 1, %s22
      %p202 = scmp.lt.s32.totalorder %s22, 5
      %p203 = pnand %p201, %p202
      %p204 = pneg %p203
      // Predicated region
      $region9: #{tpu_custom_call.1} parent=5 // pred_check
        _
      $region10: #{tpu_custom_call.1} parent=5 // pred_check_branch
        %206 = sbr.rel (%p203) target = $region12
      $region11: #{tpu_custom_call.1} parent=5 // pred_region
        %s207 = ssub.s32 %s22, 1
        // Predicated region
        $region13: #{tpu_custom_call.1} parent=11 // pred_check
          %p208 = pneg %p85
        $region14: #{tpu_custom_call.1} parent=11 // pred_check_branch
          %210 = sbr.rel (%p208) target = $region16
        $region15: #{tpu_custom_call.1} parent=11 // pred_region
          %s212 = ssub.s32 4096, 4096
          %213 = vsyncadd [#allocation8], %s212
          %s214 = sshll.u32 [#allocation7], 4
          %s215 = int_to_ptr.vmem [resolvable:$true] %s214
          %220 = dma.hbm_to_vmem [thread:$0]  %s1, 4096, %s215, [#allocation8], 64, 64, 4
        $region16: #{tpu_custom_call.1} parent=11 // pred_fallthru
          _
      $region12: #{tpu_custom_call.1} parent=5 // pred_fallthru
        _
      %p221 = scmp.lt.s32.totalorder %s22, 4
      // Predicated region
      $region17: #{tpu_custom_call.1} parent=5 // pred_check
        %p222 = pneg %p221
      $region18: #{tpu_custom_call.1} parent=5 // pred_check_branch
        %224 = sbr.rel (%p222) target = $region20
      $region19: #{tpu_custom_call.1} parent=5 // pred_region
        // Predicated region
        $region21: #{tpu_custom_call.1} parent=19 // pred_check
          %p225 = pneg %p58
        $region22: #{tpu_custom_call.1} parent=19 // pred_check_branch
          %227 = sbr.rel (%p225) target = $region24
        $region23: #{tpu_custom_call.1} parent=19 // pred_region
          %s228 = sand.u32 %s48, 1
          %s229 = scalar_lea.sflag [#allocation5], %s228
          %s230 = sand.u32 %s48, 1
          %s231 = smul.addr %s230, 64
          %s232 = scalar_lea.vmem [#allocation4], %s231
          %s233 = smul.u32 %s29, 2
          %s234 = sadd.s32 %s233, %s30
          %s235 = smul.u32 16, %s234
          %s237 = ssub.s32 1024, 1024
          %238 = vsyncadd %s229, %s237
          %s239 = smul.addr %s235, 64
          %s240 = scalar_lea.hbm %s0, %s239
          %s241 = sshll.u32 %s232, 4
          %s242 = int_to_ptr.vmem [resolvable:$true] %s241
          %247 = dma.hbm_to_vmem [thread:$0]  %s240, 1024, %s242, %s229, 64, 64, 4
        $region24: #{tpu_custom_call.1} parent=19 // pred_fallthru
          _
      $region20: #{tpu_custom_call.1} parent=5 // pred_fallthru
        _
      %p248 = scmp.le.s32.totalorder 1, %s22
      %p249 = scmp.lt.s32.totalorder %s22, 5
      %p250 = pnand %p248, %p249
      %p251 = pneg %p250
      // Predicated region
      $region25: #{tpu_custom_call.1} parent=5 // pred_check
        _
      $region26: #{tpu_custom_call.1} parent=5 // pred_check_branch
        %253 = sbr.rel (%p250) target = $region28
      $region27: #{tpu_custom_call.1} parent=5 // pred_region
        %s254 = ssub.s32 %s22, 1
        %s255 = sand.u32 %s51, 1
        %s256 = scalar_lea.sflag [#allocation5], %s255
        %s257 = sand.u32 %s51, 1
        %s258 = smul.addr %s257, 64
        %s259 = scalar_lea.vmem [#allocation4], %s258
        // Predicated region
        $region29: #{tpu_custom_call.1} parent=27 // pred_check
          %p260 = pneg %p64
        $region30: #{tpu_custom_call.1} parent=27 // pred_check_branch
          %262 = sbr.rel (%p260) target = $region32
        $region31: #{tpu_custom_call.1} parent=27 // pred_region
          %263 = dma.done %s256, 1024
        $region32: #{tpu_custom_call.1} parent=27 // pred_fallthru
          _
        // Predicated region
        $region33: #{tpu_custom_call.1} parent=27 // pred_check
          %p264 = pneg %p85
        $region34: #{tpu_custom_call.1} parent=27 // pred_check_branch
          %266 = sbr.rel (%p264) target = $region36
        $region35: #{tpu_custom_call.1} parent=27 // pred_region
          %267 = dma.done [#allocation8], 4096
        $region36: #{tpu_custom_call.1} parent=27 // pred_fallthru
          _
        %s268 = sand.u32 %s51, 1
        %s269 = scalar_lea.sflag [#allocation5], %s268
        %s270 = sand.u32 %s51, 1
        %s271 = smul.addr %s270, 64
        %s272 = scalar_lea.vmem [#allocation4], %s271
        %p273 = pneg %p64
        %p274 = pneg %p61
        %p275 = pneg %p85
        %p276 = pneg %p82
        %p277 = pneg %p111
        %p278 = pneg %p108
        %s279 = sand.u32 %s98, 1
        %s280 = scalar_lea.sflag [#allocation6], %s279
        %s281 = sand.u32 %s98, 1
        %s282 = smul.addr %s281, 4
        %s283 = scalar_lea.vmem [#allocation9], %s282
        %p284 = pneg %p137
        %p285 = pneg %p134
        %s286 = sand.u32 %s27, 1
        %s287 = scalar_lea.sflag [#allocation11], %s286
        %s288 = sand.u32 %s124, 1
        %s289 = smul.addr %s288, 4
        %s290 = scalar_lea.vmem [#allocation10], %s289
        %p291 = pneg %p163
        %p292 = pneg %p160
        %s293 = sand.u32 %s27, 1
        %s294 = scalar_lea.sflag [#allocation11], %s293
        %s295 = sand.u32 %s150, 1
        %s296 = smul.addr %s295, 4
        %s297 = scalar_lea.vmem [#allocation12], %s296
        %p298 = pneg %p193
        %p299 = pneg %p190
        %s300 = smul.u32 %s31, 2
        %s301 = sadd.s32 %s300, %s32
        %s302 = smul.u32 16, %s301
        %p303 = scmp.lt.s32.totalorder %s302, 63
        %s304 = scalar_select %p303, %s302, 63
        %s305 = smul.addr %s304, 8
        %s306 = scalar_lea.vmem %s5, %s305
        %s307 = smul.u32 %s31, 2
        %s308 = sadd.s32 %s307, %s32
        %s309 = smul.u32 16, %s308
        %s310 = smul.u32 %s31, 2
        %s311 = sadd.s32 %s310, %s32
        %s312 = smul.u32 16, %s311
        %p313 = scmp.lt.s32.totalorder %s312, 63
        %s314 = scalar_select %p313, %s312, 63
        %s315 = smul.addr %s314, 8
        %s316 = scalar_lea.vmem %s5, %s315
        %s317 = smul.u32 %s31, 2
        %s318 = sadd.s32 %s317, %s32
        %s319 = smul.u32 16, %s318
        %s321 = smul.u32 %s31, 2
        %s322 = sadd.s32 %s321, %s32
        %v323 = vld [vmem:[%s259] sm:$0xf]
        %v324 = vld [vmem:[%s259 + $0x4] sm:$0xf]
        %v325 = vld [vmem:[%s259 + $0x8] sm:$0xf]
        %v326 = vld [vmem:[%s259 + $0xc] sm:$0xf]
        %v327 = vld [vmem:[%s259 + $0x10] sm:$0xf]
        %v328 = vld [vmem:[%s259 + $0x14] sm:$0xf]
        %v329 = vld [vmem:[%s259 + $0x18] sm:$0xf]
        %v330 = vld [vmem:[%s259 + $0x1c] sm:$0xf]
        %v331 = vld [vmem:[%s259 + $0x20] sm:$0xf]
        %v332 = vld [vmem:[%s259 + $0x24] sm:$0xf]
        %v333 = vld [vmem:[%s259 + $0x28] sm:$0xf]
        %v334 = vld [vmem:[%s259 + $0x2c] sm:$0xf]
        %v335 = vld [vmem:[%s259 + $0x30] sm:$0xf]
        %v336 = vld [vmem:[%s259 + $0x34] sm:$0xf]
        %v337 = vld [vmem:[%s259 + $0x38] sm:$0xf]
        %v338 = vld [vmem:[%s259 + $0x3c] sm:$0xf]
        %v339 = vld [vmem:[#allocation7] sm:$0xf]
        %v340 = vld [vmem:[#allocation7 + $0x4] sm:$0xf]
        %v341 = vld [vmem:[#allocation7 + $0x8] sm:$0xf]
        %v342 = vld [vmem:[#allocation7 + $0xc] sm:$0xf]
        %v343 = vld [vmem:[#allocation7 + $0x10] sm:$0xf]
        %v344 = vld [vmem:[#allocation7 + $0x14] sm:$0xf]
        %v345 = vld [vmem:[#allocation7 + $0x18] sm:$0xf]
        %v346 = vld [vmem:[#allocation7 + $0x1c] sm:$0xf]
        %v347 = vld [vmem:[#allocation7 + $0x20] sm:$0xf]
        %v348 = vld [vmem:[#allocation7 + $0x24] sm:$0xf]
        %v349 = vld [vmem:[#allocation7 + $0x28] sm:$0xf]
        %v350 = vld [vmem:[#allocation7 + $0x2c] sm:$0xf]
        %v351 = vld [vmem:[#allocation7 + $0x30] sm:$0xf]
        %v352 = vld [vmem:[#allocation7 + $0x34] sm:$0xf]
        %v353 = vld [vmem:[#allocation7 + $0x38] sm:$0xf]
        %v354 = vld [vmem:[#allocation7 + $0x3c] sm:$0xf]
        %v355 = vld [vmem:[#allocation7 + $0x40] sm:$0xf]
        %v356 = vld [vmem:[#allocation7 + $0x44] sm:$0xf]
        %v357 = vld [vmem:[#allocation7 + $0x48] sm:$0xf]
        %v358 = vld [vmem:[#allocation7 + $0x4c] sm:$0xf]
        %v359 = vld [vmem:[#allocation7 + $0x50] sm:$0xf]
        %v360 = vld [vmem:[#allocation7 + $0x54] sm:$0xf]
        %v361 = vld [vmem:[#allocation7 + $0x58] sm:$0xf]
        %v362 = vld [vmem:[#allocation7 + $0x5c] sm:$0xf]
        %v363 = vld [vmem:[#allocation7 + $0x60] sm:$0xf]
        %v364 = vld [vmem:[#allocation7 + $0x64] sm:$0xf]
        %v365 = vld [vmem:[#allocation7 + $0x68] sm:$0xf]
        %v366 = vld [vmem:[#allocation7 + $0x6c] sm:$0xf]
        %v367 = vld [vmem:[#allocation7 + $0x70] sm:$0xf]
        %v368 = vld [vmem:[#allocation7 + $0x74] sm:$0xf]
        %v369 = vld [vmem:[#allocation7 + $0x78] sm:$0xf]
        %v370 = vld [vmem:[#allocation7 + $0x7c] sm:$0xf]
        %v371 = vld [vmem:[#allocation7 + $0x80] sm:$0xf]
        %v372 = vld [vmem:[#allocation7 + $0x84] sm:$0xf]
        %v373 = vld [vmem:[#allocation7 + $0x88] sm:$0xf]
        %v374 = vld [vmem:[#allocation7 + $0x8c] sm:$0xf]
        %v375 = vld [vmem:[#allocation7 + $0x90] sm:$0xf]
        %v376 = vld [vmem:[#allocation7 + $0x94] sm:$0xf]
        %v377 = vld [vmem:[#allocation7 + $0x98] sm:$0xf]
        %v378 = vld [vmem:[#allocation7 + $0x9c] sm:$0xf]
        %v379 = vld [vmem:[#allocation7 + $0xa0] sm:$0xf]
        %v380 = vld [vmem:[#allocation7 + $0xa4] sm:$0xf]
        %v381 = vld [vmem:[#allocation7 + $0xa8] sm:$0xf]
        %v382 = vld [vmem:[#allocation7 + $0xac] sm:$0xf]
        %v383 = vld [vmem:[#allocation7 + $0xb0] sm:$0xf]
        %v384 = vld [vmem:[#allocation7 + $0xb4] sm:$0xf]
        %v385 = vld [vmem:[#allocation7 + $0xb8] sm:$0xf]
        %v386 = vld [vmem:[#allocation7 + $0xbc] sm:$0xf]
        %v387 = vld [vmem:[#allocation7 + $0xc0] sm:$0xf]
        %v388 = vld [vmem:[#allocation7 + $0xc4] sm:$0xf]
        %v389 = vld [vmem:[#allocation7 + $0xc8] sm:$0xf]
        %v390 = vld [vmem:[#allocation7 + $0xcc] sm:$0xf]
        %v391 = vld [vmem:[#allocation7 + $0xd0] sm:$0xf]
        %v392 = vld [vmem:[#allocation7 + $0xd4] sm:$0xf]
        %v393 = vld [vmem:[#allocation7 + $0xd8] sm:$0xf]
        %v394 = vld [vmem:[#allocation7 + $0xdc] sm:$0xf]
        %v395 = vld [vmem:[#allocation7 + $0xe0] sm:$0xf]
        %v396 = vld [vmem:[#allocation7 + $0xe4] sm:$0xf]
        %v397 = vld [vmem:[#allocation7 + $0xe8] sm:$0xf]
        %v398 = vld [vmem:[#allocation7 + $0xec] sm:$0xf]
        %v399 = vld [vmem:[#allocation7 + $0xf0] sm:$0xf]
        %v400 = vld [vmem:[#allocation7 + $0xf4] sm:$0xf]
        %v401 = vld [vmem:[#allocation7 + $0xf8] sm:$0xf]
        %v402 = vld [vmem:[#allocation7 + $0xfc] sm:$0xf]
        %v419 = vunpack.c.l.b16 %v323
        %v420 = vunpack.c.l.b16 %v324
        %v421 = vunpack.c.l.b16 %v325
        %v422 = vunpack.c.l.b16 %v326
        %v423 = vunpack.c.l.b16 %v327
        %v424 = vunpack.c.l.b16 %v328
        %v425 = vunpack.c.l.b16 %v329
        %v426 = vunpack.c.l.b16 %v330
        %v427 = vunpack.c.l.b16 %v331
        %v428 = vunpack.c.l.b16 %v332
        %v429 = vunpack.c.l.b16 %v333
        %v430 = vunpack.c.l.b16 %v334
        %v431 = vunpack.c.l.b16 %v335
        %v432 = vunpack.c.l.b16 %v336
        %v433 = vunpack.c.l.b16 %v337
        %v434 = vunpack.c.l.b16 %v338
        %v435 = vpack.c.b16 %v420, %v419
        %v436 = vpack.c.b16 %v422, %v421
        %v437 = vpack.c.b16 %v424, %v423
        %v438 = vpack.c.b16 %v426, %v425
        %v439 = vpack.c.b16 %v428, %v427
        %v440 = vpack.c.b16 %v430, %v429
        %v441 = vpack.c.b16 %v432, %v431
        %v442 = vpack.c.b16 %v434, %v433
        %v515 = vunpack.c.l.b16 %v339
        %v516 = vunpack.c.l.b16 %v340
        %v517 = vunpack.c.l.b16 %v341
        %v518 = vunpack.c.l.b16 %v342
        %v519 = vunpack.c.l.b16 %v343
        %v520 = vunpack.c.l.b16 %v344
        %v521 = vunpack.c.l.b16 %v345
        %v522 = vunpack.c.l.b16 %v346
        %v523 = vunpack.c.l.b16 %v347
        %v524 = vunpack.c.l.b16 %v348
        %v525 = vunpack.c.l.b16 %v349
        %v526 = vunpack.c.l.b16 %v350
        %v527 = vunpack.c.l.b16 %v351
        %v528 = vunpack.c.l.b16 %v352
        %v529 = vunpack.c.l.b16 %v353
        %v530 = vunpack.c.l.b16 %v354
        %v531 = vunpack.c.l.b16 %v355
        %v532 = vunpack.c.l.b16 %v356
        %v533 = vunpack.c.l.b16 %v357
        %v534 = vunpack.c.l.b16 %v358
        %v535 = vunpack.c.l.b16 %v359
        %v536 = vunpack.c.l.b16 %v360
        %v537 = vunpack.c.l.b16 %v361
        %v538 = vunpack.c.l.b16 %v362
        %v539 = vunpack.c.l.b16 %v363
        %v540 = vunpack.c.l.b16 %v364
        %v541 = vunpack.c.l.b16 %v365
        %v542 = vunpack.c.l.b16 %v366
        %v543 = vunpack.c.l.b16 %v367
        %v544 = vunpack.c.l.b16 %v368
        %v545 = vunpack.c.l.b16 %v369
        %v546 = vunpack.c.l.b16 %v370
        %v547 = vunpack.c.l.b16 %v371
        %v548 = vunpack.c.l.b16 %v372
        %v549 = vunpack.c.l.b16 %v373
        %v550 = vunpack.c.l.b16 %v374
        %v551 = vunpack.c.l.b16 %v375
        %v552 = vunpack.c.l.b16 %v376
        %v553 = vunpack.c.l.b16 %v377
        %v554 = vunpack.c.l.b16 %v378
        %v555 = vunpack.c.l.b16 %v379
        %v556 = vunpack.c.l.b16 %v380
        %v557 = vunpack.c.l.b16 %v381
        %v558 = vunpack.c.l.b16 %v382
        %v559 = vunpack.c.l.b16 %v383
        %v560 = vunpack.c.l.b16 %v384
        %v561 = vunpack.c.l.b16 %v385
        %v562 = vunpack.c.l.b16 %v386
        %v563 = vunpack.c.l.b16 %v387
        %v564 = vunpack.c.l.b16 %v388
        %v565 = vunpack.c.l.b16 %v389
        %v566 = vunpack.c.l.b16 %v390
        %v567 = vunpack.c.l.b16 %v391
        %v568 = vunpack.c.l.b16 %v392
        %v569 = vunpack.c.l.b16 %v393
        %v570 = vunpack.c.l.b16 %v394
        %v571 = vunpack.c.l.b16 %v395
        %v572 = vunpack.c.l.b16 %v396
        %v573 = vunpack.c.l.b16 %v397
        %v574 = vunpack.c.l.b16 %v398
        %v575 = vunpack.c.l.b16 %v399
        %v576 = vunpack.c.l.b16 %v400
        %v577 = vunpack.c.l.b16 %v401
        %v578 = vunpack.c.l.b16 %v402
        %v579 = vpack.c.b16 %v516, %v515
        %v580 = vpack.c.b16 %v518, %v517
        %v581 = vpack.c.b16 %v520, %v519
        %v582 = vpack.c.b16 %v522, %v521
        %v583 = vpack.c.b16 %v524, %v523
        %v584 = vpack.c.b16 %v526, %v525
        %v585 = vpack.c.b16 %v528, %v527
        %v586 = vpack.c.b16 %v530, %v529
        %v587 = vpack.c.b16 %v532, %v531
        %v588 = vpack.c.b16 %v534, %v533
        %v589 = vpack.c.b16 %v536, %v535
        %v590 = vpack.c.b16 %v538, %v537
        %v591 = vpack.c.b16 %v540, %v539
        %v592 = vpack.c.b16 %v542, %v541
        %v593 = vpack.c.b16 %v544, %v543
        %v594 = vpack.c.b16 %v546, %v545
        %v595 = vpack.c.b16 %v548, %v547
        %v596 = vpack.c.b16 %v550, %v549
        %v597 = vpack.c.b16 %v552, %v551
        %v598 = vpack.c.b16 %v554, %v553
        %v599 = vpack.c.b16 %v556, %v555
        %v600 = vpack.c.b16 %v558, %v557
        %v601 = vpack.c.b16 %v560, %v559
        %v602 = vpack.c.b16 %v562, %v561
        %v603 = vpack.c.b16 %v564, %v563
        %v604 = vpack.c.b16 %v566, %v565
        %v605 = vpack.c.b16 %v568, %v567
        %v606 = vpack.c.b16 %v570, %v569
        %v607 = vpack.c.b16 %v572, %v571
        %v608 = vpack.c.b16 %v574, %v573
        %v609 = vpack.c.b16 %v576, %v575
        %v610 = vpack.c.b16 %v578, %v577
        %643 = vmatprep.subr.bf16.mxu0 0
        %644 = vmatpush1.bf16.xpose.msra.mxu0 %v579
        %645 = vmatprep.subr.bf16.mxu0 0
        %646 = vmatpush1.bf16.xpose.msra.mxu0 %v580
        %647 = vmatprep.subr.bf16.mxu0 0
        %648 = vmatpush1.bf16.xpose.msra.mxu0 %v581
        %649 = vmatprep.subr.bf16.mxu0 0
        %650 = vmatpush1.bf16.xpose.msra.mxu0 %v582
        %651 = vmatprep.subr.bf16.mxu0 0
        %652 = vmatpush1.bf16.xpose.msra.mxu0 %v583
        %653 = vmatprep.subr.bf16.mxu0 0
        %654 = vmatpush1.bf16.xpose.msra.mxu0 %v584
        %655 = vmatprep.subr.bf16.mxu0 0
        %656 = vmatpush1.bf16.xpose.msra.mxu0 %v585
        %657 = vmatprep.subr.bf16.mxu0 0
        %658 = vmatpush1.bf16.xpose.msra.mxu0 %v586
        %659 = vmatprep.subr.bf16.mxu0 0
        %660 = vmatpush1.bf16.xpose.msra.mxu0 %v587
        %661 = vmatprep.subr.bf16.mxu0 0
        %662 = vmatpush1.bf16.xpose.msra.mxu0 %v588
        %663 = vmatprep.subr.bf16.mxu0 0
        %664 = vmatpush1.bf16.xpose.msra.mxu0 %v589
        %665 = vmatprep.subr.bf16.mxu0 0
        %666 = vmatpush1.bf16.xpose.msra.mxu0 %v590
        %667 = vmatprep.subr.bf16.mxu0 0
        %668 = vmatpush1.bf16.xpose.msra.mxu0 %v591
        %669 = vmatprep.subr.bf16.mxu0 0
        %670 = vmatpush1.bf16.xpose.msra.mxu0 %v592
        %671 = vmatprep.subr.bf16.mxu0 0
        %672 = vmatpush1.bf16.xpose.msra.mxu0 %v593
        %673 = vmatprep.subr.bf16.mxu0 0
        %674 = vmatpush1.bf16.xpose.msra.mxu0 %v594
        %675 = vmatprep.mubr.bf16.mxu0 0
        %676 = vmatmul.mubr.bf16.gmra.mrb[0].mxu0 %v435
        %v677 = vpop.f32.mrb[0].mxu0
        %v678 = vadd.f32 0.0, %v677
        %v679 = vpop.f32.mrb[0].mxu0
        %v680 = vadd.f32 0.0, %v679
        %v681 = vpop.f32.mrb[0].mxu0
        %v682 = vadd.f32 0.0, %v681
        %v683 = vpop.f32.mrb[0].mxu0
        %v684 = vadd.f32 0.0, %v683
        %685 = vmatprep.mubr.bf16.mxu0 0
        %686 = vmatmul.mubr.bf16.gmra.mrb[0].mxu0 %v436
        %v687 = vpop.f32.mrb[0].mxu0
        %v688 = vadd.f32 0.0, %v687
        %v689 = vpop.f32.mrb[0].mxu0
        %v690 = vadd.f32 0.0, %v689
        %v691 = vpop.f32.mrb[0].mxu0
        %v692 = vadd.f32 0.0, %v691
        %v693 = vpop.f32.mrb[0].mxu0
        %v694 = vadd.f32 0.0, %v693
        %695 = vmatprep.mubr.bf16.mxu0 0
        %696 = vmatmul.mubr.bf16.gmra.mrb[0].mxu0 %v437
        %v697 = vpop.f32.mrb[0].mxu0
        %v698 = vadd.f32 0.0, %v697
        %v699 = vpop.f32.mrb[0].mxu0
        %v700 = vadd.f32 0.0, %v699
        %v701 = vpop.f32.mrb[0].mxu0
        %v702 = vadd.f32 0.0, %v701
        %v703 = vpop.f32.mrb[0].mxu0
        %v704 = vadd.f32 0.0, %v703
        %705 = vmatprep.mubr.bf16.mxu0 0
        %706 = vmatmul.mubr.bf16.gmra.mrb[0].mxu0 %v438
        %v707 = vpop.f32.mrb[0].mxu0
        %v708 = vadd.f32 0.0, %v707
        %v709 = vpop.f32.mrb[0].mxu0
        %v710 = vadd.f32 0.0, %v709
        %v711 = vpop.f32.mrb[0].mxu0
        %v712 = vadd.f32 0.0, %v711
        %v713 = vpop.f32.mrb[0].mxu0
        %v714 = vadd.f32 0.0, %v713
        %715 = vmatprep.mubr.bf16.mxu0 0
        %716 = vmatmul.mubr.bf16.gmra.mrb[0].mxu0 %v439
        %v717 = vpop.f32.mrb[0].mxu0
        %v718 = vadd.f32 0.0, %v717
        %v719 = vpop.f32.mrb[0].mxu0
        %v720 = vadd.f32 0.0, %v719
        %v721 = vpop.f32.mrb[0].mxu0
        %v722 = vadd.f32 0.0, %v721
        %v723 = vpop.f32.mrb[0].mxu0
        %v724 = vadd.f32 0.0, %v723
        %725 = vmatprep.mubr.bf16.mxu0 0
        %726 = vmatmul.mubr.bf16.gmra.mrb[0].mxu0 %v440
        %v727 = vpop.f32.mrb[0].mxu0
        %v728 = vadd.f32 0.0, %v727
        %v729 = vpop.f32.mrb[0].mxu0
        %v730 = vadd.f32 0.0, %v729
        %v731 = vpop.f32.mrb[0].mxu0
        %v732 = vadd.f32 0.0, %v731
        %v733 = vpop.f32.mrb[0].mxu0
        %v734 = vadd.f32 0.0, %v733
        %735 = vmatprep.mubr.bf16.mxu0 0
        %736 = vmatmul.mubr.bf16.gmra.mrb[0].mxu0 %v441
        %v737 = vpop.f32.mrb[0].mxu0
        %v738 = vadd.f32 0.0, %v737
        %v739 = vpop.f32.mrb[0].mxu0
        %v740 = vadd.f32 0.0, %v739
        %v741 = vpop.f32.mrb[0].mxu0
        %v742 = vadd.f32 0.0, %v741
        %v743 = vpop.f32.mrb[0].mxu0
        %v744 = vadd.f32 0.0, %v743
        %745 = vmatprep.mubr.bf16.mxu0 0
        %746 = vmatmul.mubr.bf16.gmra.mrb[0].mxu0 %v442
        %v747 = vpop.f32.mrb[0].mxu0
        %v748 = vadd.f32 0.0, %v747
        %v749 = vpop.f32.mrb[0].mxu0
        %v750 = vadd.f32 0.0, %v749
        %v751 = vpop.f32.mrb[0].mxu0
        %v752 = vadd.f32 0.0, %v751
        %v753 = vpop.f32.mrb[0].mxu0
        %v754 = vadd.f32 0.0, %v753
        %755 = vdwg.mxu0
        %756 = vmatprep.subr.bf16.mxu0 0
        %757 = vmatpush1.bf16.xpose.msra.mxu0 %v595
        %758 = vmatprep.subr.bf16.mxu0 0
        %759 = vmatpush1.bf16.xpose.msra.mxu0 %v596
        %760 = vmatprep.subr.bf16.mxu0 0
        %761 = vmatpush1.bf16.xpose.msra.mxu0 %v597
        %762 = vmatprep.subr.bf16.mxu0 0
        %763 = vmatpush1.bf16.xpose.msra.mxu0 %v598
        %764 = vmatprep.subr.bf16.mxu0 0
        %765 = vmatpush1.bf16.xpose.msra.mxu0 %v599
        %766 = vmatprep.subr.bf16.mxu0 0
        %767 = vmatpush1.bf16.xpose.msra.mxu0 %v600
        %768 = vmatprep.subr.bf16.mxu0 0
        %769 = vmatpush1.bf16.xpose.msra.mxu0 %v601
        %770 = vmatprep.subr.bf16.mxu0 0
        %771 = vmatpush1.bf16.xpose.msra.mxu0 %v602
        %772 = vmatprep.subr.bf16.mxu0 0
        %773 = vmatpush1.bf16.xpose.msra.mxu0 %v603
        %774 = vmatprep.subr.bf16.mxu0 0
        %775 = vmatpush1.bf16.xpose.msra.mxu0 %v604
        %776 = vmatprep.subr.bf16.mxu0 0
        %777 = vmatpush1.bf16.xpose.msra.mxu0 %v605
        %778 = vmatprep.subr.bf16.mxu0 0
        %779 = vmatpush1.bf16.xpose.msra.mxu0 %v606
        %780 = vmatprep.subr.bf16.mxu0 0
        %781 = vmatpush1.bf16.xpose.msra.mxu0 %v607
        %782 = vmatprep.subr.bf16.mxu0 0
        %783 = vmatpush1.bf16.xpose.msra.mxu0 %v608
        %784 = vmatprep.subr.bf16.mxu0 0
        %785 = vmatpush1.bf16.xpose.msra.mxu0 %v609
        %786 = vmatprep.subr.bf16.mxu0 0
        %787 = vmatpush1.bf16.xpose.msra.mxu0 %v610
        %788 = vmatprep.mubr.bf16.mxu0 0
        %789 = vmatmul.mubr.bf16.gmra.mrb[0].mxu0 %v435
        %v790 = vpop.f32.mrb[0].mxu0
        %v791 = vadd.f32 0.0, %v790
        %v792 = vpop.f32.mrb[0].mxu0
        %v793 = vadd.f32 0.0, %v792
        %v794 = vpop.f32.mrb[0].mxu0
        %v795 = vadd.f32 0.0, %v794
        %v796 = vpop.f32.mrb[0].mxu0
        %v797 = vadd.f32 0.0, %v796
        %798 = vmatprep.mubr.bf16.mxu0 0
        %799 = vmatmul.mubr.bf16.gmra.mrb[0].mxu0 %v436
        %v800 = vpop.f32.mrb[0].mxu0
        %v801 = vadd.f32 0.0, %v800
        %v802 = vpop.f32.mrb[0].mxu0
        %v803 = vadd.f32 0.0, %v802
        %v804 = vpop.f32.mrb[0].mxu0
        %v805 = vadd.f32 0.0, %v804
        %v806 = vpop.f32.mrb[0].mxu0
        %v807 = vadd.f32 0.0, %v806
        %808 = vmatprep.mubr.bf16.mxu0 0
        %809 = vmatmul.mubr.bf16.gmra.mrb[0].mxu0 %v437
        %v810 = vpop.f32.mrb[0].mxu0
        %v811 = vadd.f32 0.0, %v810
        %v812 = vpop.f32.mrb[0].mxu0
        %v813 = vadd.f32 0.0, %v812
        %v814 = vpop.f32.mrb[0].mxu0
        %v815 = vadd.f32 0.0, %v814
        %v816 = vpop.f32.mrb[0].mxu0
        %v817 = vadd.f32 0.0, %v816
        %818 = vmatprep.mubr.bf16.mxu0 0
        %819 = vmatmul.mubr.bf16.gmra.mrb[0].mxu0 %v438
        %v820 = vpop.f32.mrb[0].mxu0
        %v821 = vadd.f32 0.0, %v820
        %v822 = vpop.f32.mrb[0].mxu0
        %v823 = vadd.f32 0.0, %v822
        %v824 = vpop.f32.mrb[0].mxu0
        %v825 = vadd.f32 0.0, %v824
        %v826 = vpop.f32.mrb[0].mxu0
        %v827 = vadd.f32 0.0, %v826
        %828 = vmatprep.mubr.bf16.mxu0 0
        %829 = vmatmul.mubr.bf16.gmra.mrb[0].mxu0 %v439
        %v830 = vpop.f32.mrb[0].mxu0
        %v831 = vadd.f32 0.0, %v830
        %v832 = vpop.f32.mrb[0].mxu0
        %v833 = vadd.f32 0.0, %v832
        %v834 = vpop.f32.mrb[0].mxu0
        %v835 = vadd.f32 0.0, %v834
        %v836 = vpop.f32.mrb[0].mxu0
        %v837 = vadd.f32 0.0, %v836
        %838 = vmatprep.mubr.bf16.mxu0 0
        %839 = vmatmul.mubr.bf16.gmra.mrb[0].mxu0 %v440
        %v840 = vpop.f32.mrb[0].mxu0
        %v841 = vadd.f32 0.0, %v840
        %v842 = vpop.f32.mrb[0].mxu0
        %v843 = vadd.f32 0.0, %v842
        %v844 = vpop.f32.mrb[0].mxu0
        %v845 = vadd.f32 0.0, %v844
        %v846 = vpop.f32.mrb[0].mxu0
        %v847 = vadd.f32 0.0, %v846
        %848 = vmatprep.mubr.bf16.mxu0 0
        %849 = vmatmul.mubr.bf16.gmra.mrb[0].mxu0 %v441
        %v850 = vpop.f32.mrb[0].mxu0
        %v851 = vadd.f32 0.0, %v850
        %v852 = vpop.f32.mrb[0].mxu0
        %v853 = vadd.f32 0.0, %v852
        %v854 = vpop.f32.mrb[0].mxu0
        %v855 = vadd.f32 0.0, %v854
        %v856 = vpop.f32.mrb[0].mxu0
        %v857 = vadd.f32 0.0, %v856
        %858 = vmatprep.mubr.bf16.mxu0 0
        %859 = vmatmul.mubr.bf16.gmra.mrb[0].mxu0 %v442
        %v860 = vpop.f32.mrb[0].mxu0
        %v861 = vadd.f32 0.0, %v860
        %v862 = vpop.f32.mrb[0].mxu0
        %v863 = vadd.f32 0.0, %v862
        %v864 = vpop.f32.mrb[0].mxu0
        %v865 = vadd.f32 0.0, %v864
        %v866 = vpop.f32.mrb[0].mxu0
        %v867 = vadd.f32 0.0, %v866
        %868 = vdwg.mxu0
        %v869 = vlaneseq
        %v870 = vshrl.u32 %v869, 7
        %v871 = vadd.s32 %v870, 8
        %v872 = vadd.s32 %v870, 16
        %v873 = vadd.s32 %v870, 24
        %v874 = vadd.s32 %v870, 32
        %v875 = vadd.s32 %v870, 40
        %v876 = vadd.s32 %v870, 48
        %v877 = vadd.s32 %v870, 56
        %v878 = vadd.s32 %v870, 64
        %v879 = vadd.s32 %v870, 72
        %v880 = vadd.s32 %v870, 80
        %v881 = vadd.s32 %v870, 88
        %v882 = vadd.s32 %v870, 96
        %v883 = vadd.s32 %v870, 104
        %v884 = vadd.s32 %v870, 112
        %v885 = vadd.s32 %v870, 120
        %s886 = smul.u32 %s322, 128
        %v887 = vstv %s886
        %v888 = vadd.s32 %v870, %v887
        %v889 = vadd.s32 %v871, %v887
        %v890 = vadd.s32 %v872, %v887
        %v891 = vadd.s32 %v873, %v887
        %v892 = vadd.s32 %v874, %v887
        %v893 = vadd.s32 %v875, %v887
        %v894 = vadd.s32 %v876, %v887
        %v895 = vadd.s32 %v877, %v887
        %v896 = vadd.s32 %v878, %v887
        %v897 = vadd.s32 %v879, %v887
        %v898 = vadd.s32 %v880, %v887
        %v899 = vadd.s32 %v881, %v887
        %v900 = vadd.s32 %v882, %v887
        %v901 = vadd.s32 %v883, %v887
        %v902 = vadd.s32 %v884, %v887
        %v903 = vadd.s32 %v885, %v887
        %vm904 = vcmp.lt.s32.totalorder %v888, 512
        %vm905 = vcmp.lt.s32.totalorder %v889, 512
        %vm906 = vcmp.lt.s32.totalorder %v890, 512
        %vm907 = vcmp.lt.s32.totalorder %v891, 512
        %vm908 = vcmp.lt.s32.totalorder %v892, 512
        %vm909 = vcmp.lt.s32.totalorder %v893, 512
        %vm910 = vcmp.lt.s32.totalorder %v894, 512
        %vm911 = vcmp.lt.s32.totalorder %v895, 512
        %vm912 = vcmp.lt.s32.totalorder %v896, 512
        %vm913 = vcmp.lt.s32.totalorder %v897, 512
        %vm914 = vcmp.lt.s32.totalorder %v898, 512
        %vm915 = vcmp.lt.s32.totalorder %v899, 512
        %vm916 = vcmp.lt.s32.totalorder %v900, 512
        %vm917 = vcmp.lt.s32.totalorder %v901, 512
        %vm918 = vcmp.lt.s32.totalorder %v902, 512
        %vm919 = vcmp.lt.s32.totalorder %v903, 512
        %v920 = vmax.f32 %v678, %v680
        %v921 = vmax.f32 %v920, %v791
        %v922 = vmax.f32 %v921, %v793
        %923 = vmax.xlane.f32.xlu0 %v922
        %v924 = vpop.xlane.xlu0 %923
        %v925 = vmax.f32 %v682, %v684
        %v926 = vmax.f32 %v925, %v795
        %v927 = vmax.f32 %v926, %v797
        %928 = vmax.xlane.f32.xlu0 %v927
        %v929 = vpop.xlane.xlu0 %928
        %v930 = vmax.f32 %v688, %v690
        %v931 = vmax.f32 %v930, %v801
        %v932 = vmax.f32 %v931, %v803
        %933 = vmax.xlane.f32.xlu0 %v932
        %v934 = vpop.xlane.xlu0 %933
        %v935 = vmax.f32 %v692, %v694
        %v936 = vmax.f32 %v935, %v805
        %v937 = vmax.f32 %v936, %v807
        %938 = vmax.xlane.f32.xlu0 %v937
        %v939 = vpop.xlane.xlu0 %938
        %v940 = vmax.f32 %v698, %v700
        %v941 = vmax.f32 %v940, %v811
        %v942 = vmax.f32 %v941, %v813
        %943 = vmax.xlane.f32.xlu0 %v942
        %v944 = vpop.xlane.xlu0 %943
        %v945 = vmax.f32 %v702, %v704
        %v946 = vmax.f32 %v945, %v815
        %v947 = vmax.f32 %v946, %v817
        %948 = vmax.xlane.f32.xlu0 %v947
        %v949 = vpop.xlane.xlu0 %948
        %v950 = vmax.f32 %v708, %v710
        %v951 = vmax.f32 %v950, %v821
        %v952 = vmax.f32 %v951, %v823
        %953 = vmax.xlane.f32.xlu0 %v952
        %v954 = vpop.xlane.xlu0 %953
        %v955 = vmax.f32 %v712, %v714
        %v956 = vmax.f32 %v955, %v825
        %v957 = vmax.f32 %v956, %v827
        %958 = vmax.xlane.f32.xlu0 %v957
        %v959 = vpop.xlane.xlu0 %958
        %v960 = vmax.f32 %v718, %v720
        %v961 = vmax.f32 %v960, %v831
        %v962 = vmax.f32 %v961, %v833
        %963 = vmax.xlane.f32.xlu0 %v962
        %v964 = vpop.xlane.xlu0 %963
        %v965 = vmax.f32 %v722, %v724
        %v966 = vmax.f32 %v965, %v835
        %v967 = vmax.f32 %v966, %v837
        %968 = vmax.xlane.f32.xlu0 %v967
        %v969 = vpop.xlane.xlu0 %968
        %v970 = vmax.f32 %v728, %v730
        %v971 = vmax.f32 %v970, %v841
        %v972 = vmax.f32 %v971, %v843
        %973 = vmax.xlane.f32.xlu0 %v972
        %v974 = vpop.xlane.xlu0 %973
        %v975 = vmax.f32 %v732, %v734
        %v976 = vmax.f32 %v975, %v845
        %v977 = vmax.f32 %v976, %v847
        %978 = vmax.xlane.f32.xlu0 %v977
        %v979 = vpop.xlane.xlu0 %978
        %v980 = vmax.f32 %v738, %v740
        %v981 = vmax.f32 %v980, %v851
        %v982 = vmax.f32 %v981, %v853
        %983 = vmax.xlane.f32.xlu0 %v982
        %v984 = vpop.xlane.xlu0 %983
        %v985 = vmax.f32 %v742, %v744
        %v986 = vmax.f32 %v985, %v855
        %v987 = vmax.f32 %v986, %v857
        %988 = vmax.xlane.f32.xlu0 %v987
        %v989 = vpop.xlane.xlu0 %988
        %v990 = vmax.f32 %v748, %v750
        %v991 = vmax.f32 %v990, %v861
        %v992 = vmax.f32 %v991, %v863
        %993 = vmax.xlane.f32.xlu0 %v992
        %v994 = vpop.xlane.xlu0 %993
        %v995 = vmax.f32 %v752, %v754
        %v996 = vmax.f32 %v995, %v865
        %v997 = vmax.f32 %v996, %v867
        %998 = vmax.xlane.f32.xlu0 %v997
        %v999 = vpop.xlane.xlu0 %998
        %v1000 = vsub.f32 %v678, %v924
        %v1001 = vsub.f32 %v680, %v924
        %v1002 = vsub.f32 %v791, %v924
        %v1003 = vsub.f32 %v793, %v924
        %v1004 = vsub.f32 %v682, %v929
        %v1005 = vsub.f32 %v684, %v929
        %v1006 = vsub.f32 %v795, %v929
        %v1007 = vsub.f32 %v797, %v929
        %v1008 = vsub.f32 %v688, %v934
        %v1009 = vsub.f32 %v690, %v934
        %v1010 = vsub.f32 %v801, %v934
        %v1011 = vsub.f32 %v803, %v934
        %v1012 = vsub.f32 %v692, %v939
        %v1013 = vsub.f32 %v694, %v939
        %v1014 = vsub.f32 %v805, %v939
        %v1015 = vsub.f32 %v807, %v939
        %v1016 = vsub.f32 %v698, %v944
        %v1017 = vsub.f32 %v700, %v944
        %v1018 = vsub.f32 %v811, %v944
        %v1019 = vsub.f32 %v813, %v944
        %v1020 = vsub.f32 %v702, %v949
        %v1021 = vsub.f32 %v704, %v949
        %v1022 = vsub.f32 %v815, %v949
        %v1023 = vsub.f32 %v817, %v949
        %v1024 = vsub.f32 %v708, %v954
        %v1025 = vsub.f32 %v710, %v954
        %v1026 = vsub.f32 %v821, %v954
        %v1027 = vsub.f32 %v823, %v954
        %v1028 = vsub.f32 %v712, %v959
        %v1029 = vsub.f32 %v714, %v959
        %v1030 = vsub.f32 %v825, %v959
        %v1031 = vsub.f32 %v827, %v959
        %v1032 = vsub.f32 %v718, %v964
        %v1033 = vsub.f32 %v720, %v964
        %v1034 = vsub.f32 %v831, %v964
        %v1035 = vsub.f32 %v833, %v964
        %v1036 = vsub.f32 %v722, %v969
        %v1037 = vsub.f32 %v724, %v969
        %v1038 = vsub.f32 %v835, %v969
        %v1039 = vsub.f32 %v837, %v969
        %v1040 = vsub.f32 %v728, %v974
        %v1041 = vsub.f32 %v730, %v974
        %v1042 = vsub.f32 %v841, %v974
        %v1043 = vsub.f32 %v843, %v974
        %v1044 = vsub.f32 %v732, %v979
        %v1045 = vsub.f32 %v734, %v979
        %v1046 = vsub.f32 %v845, %v979
        %v1047 = vsub.f32 %v847, %v979
        %v1048 = vsub.f32 %v738, %v984
        %v1049 = vsub.f32 %v740, %v984
        %v1050 = vsub.f32 %v851, %v984
        %v1051 = vsub.f32 %v853, %v984
        %v1052 = vsub.f32 %v742, %v989
        %v1053 = vsub.f32 %v744, %v989
        %v1054 = vsub.f32 %v855, %v989
        %v1055 = vsub.f32 %v857, %v989
        %v1056 = vsub.f32 %v748, %v994
        %v1057 = vsub.f32 %v750, %v994
        %v1058 = vsub.f32 %v861, %v994
        %v1059 = vsub.f32 %v863, %v994
        %v1060 = vsub.f32 %v752, %v999
        %v1061 = vsub.f32 %v754, %v999
        %v1062 = vsub.f32 %v865, %v999
        %v1063 = vsub.f32 %v867, %v999
        %v1064 = vmul.f32 %v1000, 1.442695
        %v1065 = vpow.pop %v1064
        %v1066 = vmul.f32 %v1001, 1.442695
        %v1067 = vpow.pop %v1066
        %v1068 = vmul.f32 %v1002, 1.442695
        %v1069 = vpow.pop %v1068
        %v1070 = vmul.f32 %v1003, 1.442695
        %v1071 = vpow.pop %v1070
        %v1072 = vmul.f32 %v1004, 1.442695
        %v1073 = vpow.pop %v1072
        %v1074 = vmul.f32 %v1005, 1.442695
        %v1075 = vpow.pop %v1074
        %v1076 = vmul.f32 %v1006, 1.442695
        %v1077 = vpow.pop %v1076
        %v1078 = vmul.f32 %v1007, 1.442695
        %v1079 = vpow.pop %v1078
        %v1080 = vmul.f32 %v1008, 1.442695
        %v1081 = vpow.pop %v1080
        %v1082 = vmul.f32 %v1009, 1.442695
        %v1083 = vpow.pop %v1082
        %v1084 = vmul.f32 %v1010, 1.442695
        %v1085 = vpow.pop %v1084
        %v1086 = vmul.f32 %v1011, 1.442695
        %v1087 = vpow.pop %v1086
        %v1088 = vmul.f32 %v1012, 1.442695
        %v1089 = vpow.pop %v1088
        %v1090 = vmul.f32 %v1013, 1.442695
        %v1091 = vpow.pop %v1090
        %v1092 = vmul.f32 %v1014, 1.442695
        %v1093 = vpow.pop %v1092
        %v1094 = vmul.f32 %v1015, 1.442695
        %v1095 = vpow.pop %v1094
        %v1096 = vmul.f32 %v1016, 1.442695
        %v1097 = vpow.pop %v1096
        %v1098 = vmul.f32 %v1017, 1.442695
        %v1099 = vpow.pop %v1098
        %v1100 = vmul.f32 %v1018, 1.442695
        %v1101 = vpow.pop %v1100
        %v1102 = vmul.f32 %v1019, 1.442695
        %v1103 = vpow.pop %v1102
        %v1104 = vmul.f32 %v1020, 1.442695
        %v1105 = vpow.pop %v1104
        %v1106 = vmul.f32 %v1021, 1.442695
        %v1107 = vpow.pop %v1106
        %v1108 = vmul.f32 %v1022, 1.442695
        %v1109 = vpow.pop %v1108
        %v1110 = vmul.f32 %v1023, 1.442695
        %v1111 = vpow.pop %v1110
        %v1112 = vmul.f32 %v1024, 1.442695
        %v1113 = vpow.pop %v1112
        %v1114 = vmul.f32 %v1025, 1.442695
        %v1115 = vpow.pop %v1114
        %v1116 = vmul.f32 %v1026, 1.442695
        %v1117 = vpow.pop %v1116
        %v1118 = vmul.f32 %v1027, 1.442695
        %v1119 = vpow.pop %v1118
        %v1120 = vmul.f32 %v1028, 1.442695
        %v1121 = vpow.pop %v1120
        %v1122 = vmul.f32 %v1029, 1.442695
        %v1123 = vpow.pop %v1122
        %v1124 = vmul.f32 %v1030, 1.442695
        %v1125 = vpow.pop %v1124
        %v1126 = vmul.f32 %v1031, 1.442695
        %v1127 = vpow.pop %v1126
        %v1128 = vmul.f32 %v1032, 1.442695
        %v1129 = vpow.pop %v1128
        %v1130 = vmul.f32 %v1033, 1.442695
        %v1131 = vpow.pop %v1130
        %v1132 = vmul.f32 %v1034, 1.442695
        %v1133 = vpow.pop %v1132
        %v1134 = vmul.f32 %v1035, 1.442695
        %v1135 = vpow.pop %v1134
        %v1136 = vmul.f32 %v1036, 1.442695
        %v1137 = vpow.pop %v1136
        %v1138 = vmul.f32 %v1037, 1.442695
        %v1139 = vpow.pop %v1138
        %v1140 = vmul.f32 %v1038, 1.442695
        %v1141 = vpow.pop %v1140
        %v1142 = vmul.f32 %v1039, 1.442695
        %v1143 = vpow.pop %v1142
        %v1144 = vmul.f32 %v1040, 1.442695
        %v1145 = vpow.pop %v1144
        %v1146 = vmul.f32 %v1041, 1.442695
        %v1147 = vpow.pop %v1146
        %v1148 = vmul.f32 %v1042, 1.442695
        %v1149 = vpow.pop %v1148
        %v1150 = vmul.f32 %v1043, 1.442695
        %v1151 = vpow.pop %v1150
        %v1152 = vmul.f32 %v1044, 1.442695
        %v1153 = vpow.pop %v1152
        %v1154 = vmul.f32 %v1045, 1.442695
        %v1155 = vpow.pop %v1154
        %v1156 = vmul.f32 %v1046, 1.442695
        %v1157 = vpow.pop %v1156
        %v1158 = vmul.f32 %v1047, 1.442695
        %v1159 = vpow.pop %v1158
        %v1160 = vmul.f32 %v1048, 1.442695
        %v1161 = vpow.pop %v1160
        %v1162 = vmul.f32 %v1049, 1.442695
        %v1163 = vpow.pop %v1162
        %v1164 = vmul.f32 %v1050, 1.442695
        %v1165 = vpow.pop %v1164
        %v1166 = vmul.f32 %v1051, 1.442695
        %v1167 = vpow.pop %v1166
        %v1168 = vmul.f32 %v1052, 1.442695
        %v1169 = vpow.pop %v1168
        %v1170 = vmul.f32 %v1053, 1.442695
        %v1171 = vpow.pop %v1170
        %v1172 = vmul.f32 %v1054, 1.442695
        %v1173 = vpow.pop %v1172
        %v1174 = vmul.f32 %v1055, 1.442695
        %v1175 = vpow.pop %v1174
        %v1176 = vmul.f32 %v1056, 1.442695
        %v1177 = vpow.pop %v1176
        %v1178 = vmul.f32 %v1057, 1.442695
        %v1179 = vpow.pop %v1178
        %v1180 = vmul.f32 %v1058, 1.442695
        %v1181 = vpow.pop %v1180
        %v1182 = vmul.f32 %v1059, 1.442695
        %v1183 = vpow.pop %v1182
        %v1184 = vmul.f32 %v1060, 1.442695
        %v1185 = vpow.pop %v1184
        %v1186 = vmul.f32 %v1061, 1.442695
        %v1187 = vpow.pop %v1186
        %v1188 = vmul.f32 %v1062, 1.442695
        %v1189 = vpow.pop %v1188
        %v1190 = vmul.f32 %v1063, 1.442695
        %v1191 = vpow.pop %v1190
        %v1192 = vadd.f32 %v1065, %v1067
        %v1193 = vadd.f32 %v1192, %v1069
        %v1194 = vadd.f32 %v1193, %v1071
        %1195 = vadd.xlane.f32.xlu0 %v1194
        %v1196 = vpop.xlane.xlu0 %1195
        %v1197 = vadd.f32 %v1073, %v1075
        %v1198 = vadd.f32 %v1197, %v1077
        %v1199 = vadd.f32 %v1198, %v1079
        %1200 = vadd.xlane.f32.xlu0 %v1199
        %v1201 = vpop.xlane.xlu0 %1200
        %v1202 = vadd.f32 %v1081, %v1083
        %v1203 = vadd.f32 %v1202, %v1085
        %v1204 = vadd.f32 %v1203, %v1087
        %1205 = vadd.xlane.f32.xlu0 %v1204
        %v1206 = vpop.xlane.xlu0 %1205
        %v1207 = vadd.f32 %v1089, %v1091
        %v1208 = vadd.f32 %v1207, %v1093
        %v1209 = vadd.f32 %v1208, %v1095
        %1210 = vadd.xlane.f32.xlu0 %v1209
        %v1211 = vpop.xlane.xlu0 %1210
        %v1212 = vadd.f32 %v1097, %v1099
        %v1213 = vadd.f32 %v1212, %v1101
        %v1214 = vadd.f32 %v1213, %v1103
        %1215 = vadd.xlane.f32.xlu0 %v1214
        %v1216 = vpop.xlane.xlu0 %1215
        %v1217 = vadd.f32 %v1105, %v1107
        %v1218 = vadd.f32 %v1217, %v1109
        %v1219 = vadd.f32 %v1218, %v1111
        %1220 = vadd.xlane.f32.xlu0 %v1219
        %v1221 = vpop.xlane.xlu0 %1220
        %v1222 = vadd.f32 %v1113, %v1115
        %v1223 = vadd.f32 %v1222, %v1117
        %v1224 = vadd.f32 %v1223, %v1119
        %1225 = vadd.xlane.f32.xlu0 %v1224
        %v1226 = vpop.xlane.xlu0 %1225
        %v1227 = vadd.f32 %v1121, %v1123
        %v1228 = vadd.f32 %v1227, %v1125
        %v1229 = vadd.f32 %v1228, %v1127
        %1230 = vadd.xlane.f32.xlu0 %v1229
        %v1231 = vpop.xlane.xlu0 %1230
        %v1232 = vadd.f32 %v1129, %v1131
        %v1233 = vadd.f32 %v1232, %v1133
        %v1234 = vadd.f32 %v1233, %v1135
        %1235 = vadd.xlane.f32.xlu0 %v1234
        %v1236 = vpop.xlane.xlu0 %1235
        %v1237 = vadd.f32 %v1137, %v1139
        %v1238 = vadd.f32 %v1237, %v1141
        %v1239 = vadd.f32 %v1238, %v1143
        %1240 = vadd.xlane.f32.xlu0 %v1239
        %v1241 = vpop.xlane.xlu0 %1240
        %v1242 = vadd.f32 %v1145, %v1147
        %v1243 = vadd.f32 %v1242, %v1149
        %v1244 = vadd.f32 %v1243, %v1151
        %1245 = vadd.xlane.f32.xlu0 %v1244
        %v1246 = vpop.xlane.xlu0 %1245
        %v1247 = vadd.f32 %v1153, %v1155
        %v1248 = vadd.f32 %v1247, %v1157
        %v1249 = vadd.f32 %v1248, %v1159
        %1250 = vadd.xlane.f32.xlu0 %v1249
        %v1251 = vpop.xlane.xlu0 %1250
        %v1252 = vadd.f32 %v1161, %v1163
        %v1253 = vadd.f32 %v1252, %v1165
        %v1254 = vadd.f32 %v1253, %v1167
        %1255 = vadd.xlane.f32.xlu0 %v1254
        %v1256 = vpop.xlane.xlu0 %1255
        %v1257 = vadd.f32 %v1169, %v1171
        %v1258 = vadd.f32 %v1257, %v1173
        %v1259 = vadd.f32 %v1258, %v1175
        %1260 = vadd.xlane.f32.xlu0 %v1259
        %v1261 = vpop.xlane.xlu0 %1260
        %v1262 = vadd.f32 %v1177, %v1179
        %v1263 = vadd.f32 %v1262, %v1181
        %v1264 = vadd.f32 %v1263, %v1183
        %1265 = vadd.xlane.f32.xlu0 %v1264
        %v1266 = vpop.xlane.xlu0 %1265
        %v1267 = vadd.f32 %v1185, %v1187
        %v1268 = vadd.f32 %v1267, %v1189
        %v1269 = vadd.f32 %v1268, %v1191
        %1270 = vadd.xlane.f32.xlu0 %v1269
        %v1271 = vpop.xlane.xlu0 %1270
        %v1272 = vlog2.pop %v1196
        %v1273 = vmul.f32 %v1272, 0.6931472
        %v1274 = vlog2.pop %v1201
        %v1275 = vmul.f32 %v1274, 0.6931472
        %v1276 = vlog2.pop %v1206
        %v1277 = vmul.f32 %v1276, 0.6931472
        %v1278 = vlog2.pop %v1211
        %v1279 = vmul.f32 %v1278, 0.6931472
        %v1280 = vlog2.pop %v1216
        %v1281 = vmul.f32 %v1280, 0.6931472
        %v1282 = vlog2.pop %v1221
        %v1283 = vmul.f32 %v1282, 0.6931472
        %v1284 = vlog2.pop %v1226
        %v1285 = vmul.f32 %v1284, 0.6931472
        %v1286 = vlog2.pop %v1231
        %v1287 = vmul.f32 %v1286, 0.6931472
        %v1288 = vlog2.pop %v1236
        %v1289 = vmul.f32 %v1288, 0.6931472
        %v1290 = vlog2.pop %v1241
        %v1291 = vmul.f32 %v1290, 0.6931472
        %v1292 = vlog2.pop %v1246
        %v1293 = vmul.f32 %v1292, 0.6931472
        %v1294 = vlog2.pop %v1251
        %v1295 = vmul.f32 %v1294, 0.6931472
        %v1296 = vlog2.pop %v1256
        %v1297 = vmul.f32 %v1296, 0.6931472
        %v1298 = vlog2.pop %v1261
        %v1299 = vmul.f32 %v1298, 0.6931472
        %v1300 = vlog2.pop %v1266
        %v1301 = vmul.f32 %v1300, 0.6931472
        %v1302 = vlog2.pop %v1271
        %v1303 = vmul.f32 %v1302, 0.6931472
        %v1304 = vadd.f32 %v924, %v1273
        %v1305 = vadd.f32 %v929, %v1275
        %v1306 = vadd.f32 %v934, %v1277
        %v1307 = vadd.f32 %v939, %v1279
        %v1308 = vadd.f32 %v944, %v1281
        %v1309 = vadd.f32 %v949, %v1283
        %v1310 = vadd.f32 %v954, %v1285
        %v1311 = vadd.f32 %v959, %v1287
        %v1312 = vadd.f32 %v964, %v1289
        %v1313 = vadd.f32 %v969, %v1291
        %v1314 = vadd.f32 %v974, %v1293
        %v1315 = vadd.f32 %v979, %v1295
        %v1316 = vadd.f32 %v984, %v1297
        %v1317 = vadd.f32 %v989, %v1299
        %v1318 = vadd.f32 %v994, %v1301
        %v1319 = vadd.f32 %v999, %v1303
        %vm1320 = vcmask 7168
        %1321 = vst.msk [vmem:[%s316] sm:$0xff] %vm1320, %v1304
        %1322 = vst.msk [vmem:[%s316 + $0x8] sm:$0xff] %vm1320, %v1305
        %1323 = vst.msk [vmem:[%s316 + $0x10] sm:$0xff] %vm1320, %v1306
        %1324 = vst.msk [vmem:[%s316 + $0x18] sm:$0xff] %vm1320, %v1307
        %1325 = vst.msk [vmem:[%s316 + $0x20] sm:$0xff] %vm1320, %v1308
        %1326 = vst.msk [vmem:[%s316 + $0x28] sm:$0xff] %vm1320, %v1309
        %1327 = vst.msk [vmem:[%s316 + $0x30] sm:$0xff] %vm1320, %v1310
        %1328 = vst.msk [vmem:[%s316 + $0x38] sm:$0xff] %vm1320, %v1311
        %1329 = vst.msk [vmem:[%s316 + $0x40] sm:$0xff] %vm1320, %v1312
        %1330 = vst.msk [vmem:[%s316 + $0x48] sm:$0xff] %vm1320, %v1313
        %1331 = vst.msk [vmem:[%s316 + $0x50] sm:$0xff] %vm1320, %v1314
        %1332 = vst.msk [vmem:[%s316 + $0x58] sm:$0xff] %vm1320, %v1315
        %1333 = vst.msk [vmem:[%s316 + $0x60] sm:$0xff] %vm1320, %v1316
        %1334 = vst.msk [vmem:[%s316 + $0x68] sm:$0xff] %vm1320, %v1317
        %1335 = vst.msk [vmem:[%s316 + $0x70] sm:$0xff] %vm1320, %v1318
        %1336 = vst.msk [vmem:[%s316 + $0x78] sm:$0xff] %vm1320, %v1319
        %p1337 = scmp.eq.s32.totalorder %s32, 0
        // Predicated region
        $region37: #{tpu_custom_call.1} parent=27 // pred_check
          %p1338 = pneg %p1337
        $region38: #{tpu_custom_call.1} parent=27 // pred_check_branch
          %1340 = sbr.rel (%p1338) target = $region40
        $region39: #{tpu_custom_call.1} parent=27 // pred_region
          %v1341 = vlaneseq
          %vm1342 = vcmp.ge.s32.totalorder %v1341, 0
          %vm1343 = vcmp.lt.s32.totalorder %v1341, 512
          %vm1344 = vmand %vm1342, %vm1343
          %1345 = vst.msk [vmem:[#allocation2] sm:$0xf] %vm1344, -1e+30
          %1346 = vst.msk [vmem:[#allocation3] sm:$0xf] %vm1344, 0.0
          %1347 = vst.msk [vmem:[%s290] sm:$0xf] %vm1344, -1e+30
          %1348 = vst.msk [vmem:[%s297] sm:$0xf] %vm1344, 0
        $region40: #{tpu_custom_call.1} parent=27 // pred_fallthru
          _
        %v1349 = vmax.f32 %v678, %v682
        %v1350 = vmax.f32 %v1349, %v688
        %v1351 = vmax.f32 %v1350, %v692
        %v1352 = vmax.f32 %v1351, %v698
        %v1353 = vmax.f32 %v1352, %v702
        %v1354 = vmax.f32 %v1353, %v708
        %v1355 = vmax.f32 %v1354, %v712
        %v1356 = vmax.f32 %v1355, %v718
        %v1357 = vmax.f32 %v1356, %v722
        %v1358 = vmax.f32 %v1357, %v728
        %v1359 = vmax.f32 %v1358, %v732
        %v1360 = vmax.f32 %v1359, %v738
        %v1361 = vmax.f32 %v1360, %v742
        %v1362 = vmax.f32 %v1361, %v748
        %v1363 = vmax.f32 %v1362, %v752
        %v1364 = vrot.slane %v1363, 4
        %v1365 = vmax.f32 %v1363, %v1364
        %v1366 = vrot.slane %v1365, 2
        %v1367 = vmax.f32 %v1365, %v1366
        %v1368 = vrot.slane %v1367, 1
        %v1369 = vmax.f32 %v1367, %v1368
        %v1370 = vmax.f32 %v680, %v684
        %v1371 = vmax.f32 %v1370, %v690
        %v1372 = vmax.f32 %v1371, %v694
        %v1373 = vmax.f32 %v1372, %v700
        %v1374 = vmax.f32 %v1373, %v704
        %v1375 = vmax.f32 %v1374, %v710
        %v1376 = vmax.f32 %v1375, %v714
        %v1377 = vmax.f32 %v1376, %v720
        %v1378 = vmax.f32 %v1377, %v724
        %v1379 = vmax.f32 %v1378, %v730
        %v1380 = vmax.f32 %v1379, %v734
        %v1381 = vmax.f32 %v1380, %v740
        %v1382 = vmax.f32 %v1381, %v744
        %v1383 = vmax.f32 %v1382, %v750
        %v1384 = vmax.f32 %v1383, %v754
        %v1385 = vrot.slane %v1384, 4
        %v1386 = vmax.f32 %v1384, %v1385
        %v1387 = vrot.slane %v1386, 2
        %v1388 = vmax.f32 %v1386, %v1387
        %v1389 = vrot.slane %v1388, 1
        %v1390 = vmax.f32 %v1388, %v1389
        %v1391 = vmax.f32 %v791, %v795
        %v1392 = vmax.f32 %v1391, %v801
        %v1393 = vmax.f32 %v1392, %v805
        %v1394 = vmax.f32 %v1393, %v811
        %v1395 = vmax.f32 %v1394, %v815
        %v1396 = vmax.f32 %v1395, %v821
        %v1397 = vmax.f32 %v1396, %v825
        %v1398 = vmax.f32 %v1397, %v831
        %v1399 = vmax.f32 %v1398, %v835
        %v1400 = vmax.f32 %v1399, %v841
        %v1401 = vmax.f32 %v1400, %v845
        %v1402 = vmax.f32 %v1401, %v851
        %v1403 = vmax.f32 %v1402, %v855
        %v1404 = vmax.f32 %v1403, %v861
        %v1405 = vmax.f32 %v1404, %v865
        %v1406 = vrot.slane %v1405, 4
        %v1407 = vmax.f32 %v1405, %v1406
        %v1408 = vrot.slane %v1407, 2
        %v1409 = vmax.f32 %v1407, %v1408
        %v1410 = vrot.slane %v1409, 1
        %v1411 = vmax.f32 %v1409, %v1410
        %v1412 = vmax.f32 %v793, %v797
        %v1413 = vmax.f32 %v1412, %v803
        %v1414 = vmax.f32 %v1413, %v807
        %v1415 = vmax.f32 %v1414, %v813
        %v1416 = vmax.f32 %v1415, %v817
        %v1417 = vmax.f32 %v1416, %v823
        %v1418 = vmax.f32 %v1417, %v827
        %v1419 = vmax.f32 %v1418, %v833
        %v1420 = vmax.f32 %v1419, %v837
        %v1421 = vmax.f32 %v1420, %v843
        %v1422 = vmax.f32 %v1421, %v847
        %v1423 = vmax.f32 %v1422, %v853
        %v1424 = vmax.f32 %v1423, %v857
        %v1425 = vmax.f32 %v1424, %v863
        %v1426 = vmax.f32 %v1425, %v867
        %v1427 = vrot.slane %v1426, 4
        %v1428 = vmax.f32 %v1426, %v1427
        %v1429 = vrot.slane %v1428, 2
        %v1430 = vmax.f32 %v1428, %v1429
        %v1431 = vrot.slane %v1430, 1
        %v1432 = vmax.f32 %v1430, %v1431
        %v1433 = vld [vmem:[#allocation2] sm:$0xf]
        %v1438 = vcombine.low %v1369, %v1390
        %v1439 = vcombine.low %v1411, %v1432
        %v1441 = vunpack.c.l.s4 1966171168
        %v1442 = vunpack.c.0.s8 %v1441
        %v1443 = vlaneseq
        %v1444 = vshrl.u32 %v1443, 7
        %v1445 = vsub.s32 %v1442, %v1444
        %v1446 = vrot.slane %v1438, %v1445
        %v1448 = vunpack.c.l.s4 1966171168
        %v1449 = vunpack.c.0.s8 %v1448
        %v1450 = vlaneseq
        %v1451 = vshrl.u32 %v1450, 7
        %v1452 = vsub.s32 %v1449, %v1451
        %v1453 = vrot.slane %v1439, %v1452
        %v1454 = vcombine.low %v1446, %v1453
        %v1456 = vunpack.c.l.s4 1966171168
        %v1457 = vunpack.c.0.s8 %v1456
        %v1458 = vlaneseq
        %v1459 = vshrl.u32 %v1458, 7
        %v1460 = vsub.s32 %v1457, %v1459
        %v1461 = vrot.slane %v1454, %v1460
        %v1463 = vmax.f32 %v1433, %v1461
        %v1464 = vmax.f32 %v924, %v944
        %v1465 = vmax.f32 %v929, %v949
        %v1466 = vmax.f32 %v934, %v954
        %v1467 = vmax.f32 %v939, %v959
        %v1468 = vmax.f32 %v1464, %v964
        %v1469 = vmax.f32 %v1465, %v969
        %v1470 = vmax.f32 %v1466, %v974
        %v1471 = vmax.f32 %v1467, %v979
        %v1472 = vmax.f32 %v1468, %v984
        %v1473 = vmax.f32 %v1469, %v989
        %v1474 = vmax.f32 %v1470, %v994
        %v1475 = vmax.f32 %v1471, %v999
        %v1476 = vmax.f32 %v1472, %v1473
        %v1477 = vmax.f32 %v1474, %v1475
        %v1478 = vmax.f32 %v1476, %v1477
        %v1479 = vrot.slane %v1478, 4
        %v1480 = vmax.f32 %v1478, %v1479
        %v1481 = vrot.slane %v1480, 2
        %v1482 = vmax.f32 %v1480, %v1481
        %v1483 = vrot.slane %v1482, 1
        %v1484 = vmax.f32 %v1482, %v1483
        %s1485 = vtos %v1484
        %v1486 = vstv %s1485
        %v1487 = vsub.f32 %v924, %v1486
        %v1488 = vsub.f32 %v929, %v1486
        %v1489 = vsub.f32 %v934, %v1486
        %v1490 = vsub.f32 %v939, %v1486
        %v1491 = vsub.f32 %v944, %v1486
        %v1492 = vsub.f32 %v949, %v1486
        %v1493 = vsub.f32 %v954, %v1486
        %v1494 = vsub.f32 %v959, %v1486
        %v1495 = vsub.f32 %v964, %v1486
        %v1496 = vsub.f32 %v969, %v1486
        %v1497 = vsub.f32 %v974, %v1486
        %v1498 = vsub.f32 %v979, %v1486
        %v1499 = vsub.f32 %v984, %v1486
        %v1500 = vsub.f32 %v989, %v1486
        %v1501 = vsub.f32 %v994, %v1486
        %v1502 = vsub.f32 %v999, %v1486
        %v1503 = vmul.f32 %v1487, 1.442695
        %v1504 = vpow.pop %v1503
        %v1505 = vmul.f32 %v1488, 1.442695
        %v1506 = vpow.pop %v1505
        %v1507 = vmul.f32 %v1489, 1.442695
        %v1508 = vpow.pop %v1507
        %v1509 = vmul.f32 %v1490, 1.442695
        %v1510 = vpow.pop %v1509
        %v1511 = vmul.f32 %v1491, 1.442695
        %v1512 = vpow.pop %v1511
        %v1513 = vmul.f32 %v1492, 1.442695
        %v1514 = vpow.pop %v1513
        %v1515 = vmul.f32 %v1493, 1.442695
        %v1516 = vpow.pop %v1515
        %v1517 = vmul.f32 %v1494, 1.442695
        %v1518 = vpow.pop %v1517
        %v1519 = vmul.f32 %v1495, 1.442695
        %v1520 = vpow.pop %v1519
        %v1521 = vmul.f32 %v1496, 1.442695
        %v1522 = vpow.pop %v1521
        %v1523 = vmul.f32 %v1497, 1.442695
        %v1524 = vpow.pop %v1523
        %v1525 = vmul.f32 %v1498, 1.442695
        %v1526 = vpow.pop %v1525
        %v1527 = vmul.f32 %v1499, 1.442695
        %v1528 = vpow.pop %v1527
        %v1529 = vmul.f32 %v1500, 1.442695
        %v1530 = vpow.pop %v1529
        %v1531 = vmul.f32 %v1501, 1.442695
        %v1532 = vpow.pop %v1531
        %v1533 = vmul.f32 %v1502, 1.442695
        %v1534 = vpow.pop %v1533
        %v1535 = vsel %vm904, %v1504, 0.0
        %v1536 = vsel %vm905, %v1506, 0.0
        %v1537 = vsel %vm906, %v1508, 0.0
        %v1538 = vsel %vm907, %v1510, 0.0
        %v1539 = vsel %vm908, %v1512, 0.0
        %v1540 = vsel %vm909, %v1514, 0.0
        %v1541 = vsel %vm910, %v1516, 0.0
        %v1542 = vsel %vm911, %v1518, 0.0
        %v1543 = vsel %vm912, %v1520, 0.0
        %v1544 = vsel %vm913, %v1522, 0.0
        %v1545 = vsel %vm914, %v1524, 0.0
        %v1546 = vsel %vm915, %v1526, 0.0
        %v1547 = vsel %vm916, %v1528, 0.0
        %v1548 = vsel %vm917, %v1530, 0.0
        %v1549 = vsel %vm918, %v1532, 0.0
        %v1550 = vsel %vm919, %v1534, 0.0
        %v1551 = vmul.f32 %v1065, %v1535
        %v1552 = vmul.f32 %v1067, %v1535
        %v1553 = vmul.f32 %v1069, %v1535
        %v1554 = vmul.f32 %v1071, %v1535
        %v1555 = vmul.f32 %v1073, %v1536
        %v1556 = vmul.f32 %v1075, %v1536
        %v1557 = vmul.f32 %v1077, %v1536
        %v1558 = vmul.f32 %v1079, %v1536
        %v1559 = vmul.f32 %v1081, %v1537
        %v1560 = vmul.f32 %v1083, %v1537
        %v1561 = vmul.f32 %v1085, %v1537
        %v1562 = vmul.f32 %v1087, %v1537
        %v1563 = vmul.f32 %v1089, %v1538
        %v1564 = vmul.f32 %v1091, %v1538
        %v1565 = vmul.f32 %v1093, %v1538
        %v1566 = vmul.f32 %v1095, %v1538
        %v1567 = vmul.f32 %v1097, %v1539
        %v1568 = vmul.f32 %v1099, %v1539
        %v1569 = vmul.f32 %v1101, %v1539
        %v1570 = vmul.f32 %v1103, %v1539
        %v1571 = vmul.f32 %v1105, %v1540
        %v1572 = vmul.f32 %v1107, %v1540
        %v1573 = vmul.f32 %v1109, %v1540
        %v1574 = vmul.f32 %v1111, %v1540
        %v1575 = vmul.f32 %v1113, %v1541
        %v1576 = vmul.f32 %v1115, %v1541
        %v1577 = vmul.f32 %v1117, %v1541
        %v1578 = vmul.f32 %v1119, %v1541
        %v1579 = vmul.f32 %v1121, %v1542
        %v1580 = vmul.f32 %v1123, %v1542
        %v1581 = vmul.f32 %v1125, %v1542
        %v1582 = vmul.f32 %v1127, %v1542
        %v1583 = vmul.f32 %v1129, %v1543
        %v1584 = vmul.f32 %v1131, %v1543
        %v1585 = vmul.f32 %v1133, %v1543
        %v1586 = vmul.f32 %v1135, %v1543
        %v1587 = vmul.f32 %v1137, %v1544
        %v1588 = vmul.f32 %v1139, %v1544
        %v1589 = vmul.f32 %v1141, %v1544
        %v1590 = vmul.f32 %v1143, %v1544
        %v1591 = vmul.f32 %v1145, %v1545
        %v1592 = vmul.f32 %v1147, %v1545
        %v1593 = vmul.f32 %v1149, %v1545
        %v1594 = vmul.f32 %v1151, %v1545
        %v1595 = vmul.f32 %v1153, %v1546
        %v1596 = vmul.f32 %v1155, %v1546
        %v1597 = vmul.f32 %v1157, %v1546
        %v1598 = vmul.f32 %v1159, %v1546
        %v1599 = vmul.f32 %v1161, %v1547
        %v1600 = vmul.f32 %v1163, %v1547
        %v1601 = vmul.f32 %v1165, %v1547
        %v1602 = vmul.f32 %v1167, %v1547
        %v1603 = vmul.f32 %v1169, %v1548
        %v1604 = vmul.f32 %v1171, %v1548
        %v1605 = vmul.f32 %v1173, %v1548
        %v1606 = vmul.f32 %v1175, %v1548
        %v1607 = vmul.f32 %v1177, %v1549
        %v1608 = vmul.f32 %v1179, %v1549
        %v1609 = vmul.f32 %v1181, %v1549
        %v1610 = vmul.f32 %v1183, %v1549
        %v1611 = vmul.f32 %v1185, %v1550
        %v1612 = vmul.f32 %v1187, %v1550
        %v1613 = vmul.f32 %v1189, %v1550
        %v1614 = vmul.f32 %v1191, %v1550
        %v1615 = vadd.f32 %v1551, %v1555
        %v1616 = vadd.f32 %v1615, %v1559
        %v1617 = vadd.f32 %v1616, %v1563
        %v1618 = vadd.f32 %v1617, %v1567
        %v1619 = vadd.f32 %v1618, %v1571
        %v1620 = vadd.f32 %v1619, %v1575
        %v1621 = vadd.f32 %v1620, %v1579
        %v1622 = vadd.f32 %v1621, %v1583
        %v1623 = vadd.f32 %v1622, %v1587
        %v1624 = vadd.f32 %v1623, %v1591
        %v1625 = vadd.f32 %v1624, %v1595
        %v1626 = vadd.f32 %v1625, %v1599
        %v1627 = vadd.f32 %v1626, %v1603
        %v1628 = vadd.f32 %v1627, %v1607
        %v1629 = vadd.f32 %v1628, %v1611
        %v1630 = vrot.slane %v1629, 4
        %v1631 = vadd.f32 %v1629, %v1630
        %v1632 = vrot.slane %v1631, 2
        %v1633 = vadd.f32 %v1631, %v1632
        %v1634 = vrot.slane %v1633, 1
        %v1635 = vadd.f32 %v1633, %v1634
        %v1636 = vadd.f32 %v1552, %v1556
        %v1637 = vadd.f32 %v1636, %v1560
        %v1638 = vadd.f32 %v1637, %v1564
        %v1639 = vadd.f32 %v1638, %v1568
        %v1640 = vadd.f32 %v1639, %v1572
        %v1641 = vadd.f32 %v1640, %v1576
        %v1642 = vadd.f32 %v1641, %v1580
        %v1643 = vadd.f32 %v1642, %v1584
        %v1644 = vadd.f32 %v1643, %v1588
        %v1645 = vadd.f32 %v1644, %v1592
        %v1646 = vadd.f32 %v1645, %v1596
        %v1647 = vadd.f32 %v1646, %v1600
        %v1648 = vadd.f32 %v1647, %v1604
        %v1649 = vadd.f32 %v1648, %v1608
        %v1650 = vadd.f32 %v1649, %v1612
        %v1651 = vrot.slane %v1650, 4
        %v1652 = vadd.f32 %v1650, %v1651
        %v1653 = vrot.slane %v1652, 2
        %v1654 = vadd.f32 %v1652, %v1653
        %v1655 = vrot.slane %v1654, 1
        %v1656 = vadd.f32 %v1654, %v1655
        %v1657 = vadd.f32 %v1553, %v1557
        %v1658 = vadd.f32 %v1657, %v1561
        %v1659 = vadd.f32 %v1658, %v1565
        %v1660 = vadd.f32 %v1659, %v1569
        %v1661 = vadd.f32 %v1660, %v1573
        %v1662 = vadd.f32 %v1661, %v1577
        %v1663 = vadd.f32 %v1662, %v1581
        %v1664 = vadd.f32 %v1663, %v1585
        %v1665 = vadd.f32 %v1664, %v1589
        %v1666 = vadd.f32 %v1665, %v1593
        %v1667 = vadd.f32 %v1666, %v1597
        %v1668 = vadd.f32 %v1667, %v1601
        %v1669 = vadd.f32 %v1668, %v1605
        %v1670 = vadd.f32 %v1669, %v1609
        %v1671 = vadd.f32 %v1670, %v1613
        %v1672 = vrot.slane %v1671, 4
        %v1673 = vadd.f32 %v1671, %v1672
        %v1674 = vrot.slane %v1673, 2
        %v1675 = vadd.f32 %v1673, %v1674
        %v1676 = vrot.slane %v1675, 1
        %v1677 = vadd.f32 %v1675, %v1676
        %v1678 = vadd.f32 %v1554, %v1558
        %v1679 = vadd.f32 %v1678, %v1562
        %v1680 = vadd.f32 %v1679, %v1566
        %v1681 = vadd.f32 %v1680, %v1570
        %v1682 = vadd.f32 %v1681, %v1574
        %v1683 = vadd.f32 %v1682, %v1578
        %v1684 = vadd.f32 %v1683, %v1582
        %v1685 = vadd.f32 %v1684, %v1586
        %v1686 = vadd.f32 %v1685, %v1590
        %v1687 = vadd.f32 %v1686, %v1594
        %v1688 = vadd.f32 %v1687, %v1598
        %v1689 = vadd.f32 %v1688, %v1602
        %v1690 = vadd.f32 %v1689, %v1606
        %v1691 = vadd.f32 %v1690, %v1610
        %v1692 = vadd.f32 %v1691, %v1614
        %v1693 = vrot.slane %v1692, 4
        %v1694 = vadd.f32 %v1692, %v1693
        %v1695 = vrot.slane %v1694, 2
        %v1696 = vadd.f32 %v1694, %v1695
        %v1697 = vrot.slane %v1696, 1
        %v1698 = vadd.f32 %v1696, %v1697
        %v1699 = vsub.f32 %v1486, %v1463
        %v1700 = vmin.f32 %v1699, 80.0
        %v1701 = vmul.f32 %v1700, 1.442695
        %v1702 = vpow.pop %v1701
        %v1703 = vld [vmem:[#allocation3] sm:$0xf]
        %v1704 = vsub.f32 %v1433, %v1463
        %v1705 = vmul.f32 %v1704, 1.442695
        %v1706 = vpow.pop %v1705
        %v1707 = vmul.f32 %v1703, %v1706
        %v1709 = vlaneseq
        %v1710 = vshrl.u32 %v1709, 7
        %v1711 = vsub.s32 0, %v1710
        %v1712 = vrot.slane %v1702, %v1711
        %v1713 = vlaneseq
        %v1714 = vshrl.u32 %v1713, 7
        %v1715 = vsub.s32 1, %v1714
        %v1716 = vrot.slane %v1702, %v1715
        %v1717 = vlaneseq
        %v1718 = vshrl.u32 %v1717, 7
        %v1719 = vsub.s32 2, %v1718
        %v1720 = vrot.slane %v1702, %v1719
        %v1721 = vlaneseq
        %v1722 = vshrl.u32 %v1721, 7
        %v1723 = vsub.s32 3, %v1722
        %v1724 = vrot.slane %v1702, %v1723
        %v1729 = vmul.f32 %v1635, %v1712
        %v1730 = vmul.f32 %v1656, %v1716
        %v1731 = vmul.f32 %v1677, %v1720
        %v1732 = vmul.f32 %v1698, %v1724
        %v1737 = vcombine.low %v1729, %v1730
        %v1738 = vcombine.low %v1731, %v1732
        %v1740 = vunpack.c.l.s4 1966171168
        %v1741 = vunpack.c.0.s8 %v1740
        %v1742 = vlaneseq
        %v1743 = vshrl.u32 %v1742, 7
        %v1744 = vsub.s32 %v1741, %v1743
        %v1745 = vrot.slane %v1737, %v1744
        %v1747 = vunpack.c.l.s4 1966171168
        %v1748 = vunpack.c.0.s8 %v1747
        %v1749 = vlaneseq
        %v1750 = vshrl.u32 %v1749, 7
        %v1751 = vsub.s32 %v1748, %v1750
        %v1752 = vrot.slane %v1738, %v1751
        %v1753 = vcombine.low %v1745, %v1752
        %v1755 = vunpack.c.l.s4 1966171168
        %v1756 = vunpack.c.0.s8 %v1755
        %v1757 = vlaneseq
        %v1758 = vshrl.u32 %v1757, 7
        %v1759 = vsub.s32 %v1756, %v1758
        %v1760 = vrot.slane %v1753, %v1759
        %v1762 = vadd.f32 %v1707, %v1760
        %v1763 = vlaneseq
        %vm1764 = vcmp.ge.s32.totalorder %v1763, 0
        %vm1765 = vcmp.lt.s32.totalorder %v1763, 512
        %vm1766 = vmand %vm1764, %vm1765
        %1767 = vst.msk [vmem:[#allocation3] sm:$0xf] %vm1766, %v1762
        %1768 = vst.msk [vmem:[#allocation2] sm:$0xf] %vm1766, %v1463
        %v1769 = vmul.f32 %v1304, 0.5
        %v1770 = vmul.f32 %v1305, 0.5
        %v1771 = vmul.f32 %v1306, 0.5
        %v1772 = vmul.f32 %v1307, 0.5
        %v1773 = vmul.f32 %v1308, 0.5
        %v1774 = vmul.f32 %v1309, 0.5
        %v1775 = vmul.f32 %v1310, 0.5
        %v1776 = vmul.f32 %v1311, 0.5
        %v1777 = vmul.f32 %v1312, 0.5
        %v1778 = vmul.f32 %v1313, 0.5
        %v1779 = vmul.f32 %v1314, 0.5
        %v1780 = vmul.f32 %v1315, 0.5
        %v1781 = vmul.f32 %v1316, 0.5
        %v1782 = vmul.f32 %v1317, 0.5
        %v1783 = vmul.f32 %v1318, 0.5
        %v1784 = vmul.f32 %v1319, 0.5
        %v1785 = vsub.f32 %v678, %v1769
        %v1786 = vsub.f32 %v680, %v1769
        %v1787 = vsub.f32 %v791, %v1769
        %v1788 = vsub.f32 %v793, %v1769
        %v1789 = vsub.f32 %v682, %v1770
        %v1790 = vsub.f32 %v684, %v1770
        %v1791 = vsub.f32 %v795, %v1770
        %v1792 = vsub.f32 %v797, %v1770
        %v1793 = vsub.f32 %v688, %v1771
        %v1794 = vsub.f32 %v690, %v1771
        %v1795 = vsub.f32 %v801, %v1771
        %v1796 = vsub.f32 %v803, %v1771
        %v1797 = vsub.f32 %v692, %v1772
        %v1798 = vsub.f32 %v694, %v1772
        %v1799 = vsub.f32 %v805, %v1772
        %v1800 = vsub.f32 %v807, %v1772
        %v1801 = vsub.f32 %v698, %v1773
        %v1802 = vsub.f32 %v700, %v1773
        %v1803 = vsub.f32 %v811, %v1773
        %v1804 = vsub.f32 %v813, %v1773
        %v1805 = vsub.f32 %v702, %v1774
        %v1806 = vsub.f32 %v704, %v1774
        %v1807 = vsub.f32 %v815, %v1774
        %v1808 = vsub.f32 %v817, %v1774
        %v1809 = vsub.f32 %v708, %v1775
        %v1810 = vsub.f32 %v710, %v1775
        %v1811 = vsub.f32 %v821, %v1775
        %v1812 = vsub.f32 %v823, %v1775
        %v1813 = vsub.f32 %v712, %v1776
        %v1814 = vsub.f32 %v714, %v1776
        %v1815 = vsub.f32 %v825, %v1776
        %v1816 = vsub.f32 %v827, %v1776
        %v1817 = vsub.f32 %v718, %v1777
        %v1818 = vsub.f32 %v720, %v1777
        %v1819 = vsub.f32 %v831, %v1777
        %v1820 = vsub.f32 %v833, %v1777
        %v1821 = vsub.f32 %v722, %v1778
        %v1822 = vsub.f32 %v724, %v1778
        %v1823 = vsub.f32 %v835, %v1778
        %v1824 = vsub.f32 %v837, %v1778
        %v1825 = vsub.f32 %v728, %v1779
        %v1826 = vsub.f32 %v730, %v1779
        %v1827 = vsub.f32 %v841, %v1779
        %v1828 = vsub.f32 %v843, %v1779
        %v1829 = vsub.f32 %v732, %v1780
        %v1830 = vsub.f32 %v734, %v1780
        %v1831 = vsub.f32 %v845, %v1780
        %v1832 = vsub.f32 %v847, %v1780
        %v1833 = vsub.f32 %v738, %v1781
        %v1834 = vsub.f32 %v740, %v1781
        %v1835 = vsub.f32 %v851, %v1781
        %v1836 = vsub.f32 %v853, %v1781
        %v1837 = vsub.f32 %v742, %v1782
        %v1838 = vsub.f32 %v744, %v1782
        %v1839 = vsub.f32 %v855, %v1782
        %v1840 = vsub.f32 %v857, %v1782
        %v1841 = vsub.f32 %v748, %v1783
        %v1842 = vsub.f32 %v750, %v1783
        %v1843 = vsub.f32 %v861, %v1783
        %v1844 = vsub.f32 %v863, %v1783
        %v1845 = vsub.f32 %v752, %v1784
        %v1846 = vsub.f32 %v754, %v1784
        %v1847 = vsub.f32 %v865, %v1784
        %v1848 = vsub.f32 %v867, %v1784
        %v1849 = vsel %vm904, 1, 0
        %v1850 = vsel %vm905, 1, 0
        %v1851 = vsel %vm906, 1, 0
        %v1852 = vsel %vm907, 1, 0
        %v1853 = vsel %vm908, 1, 0
        %v1854 = vsel %vm909, 1, 0
        %v1855 = vsel %vm910, 1, 0
        %v1856 = vsel %vm911, 1, 0
        %v1857 = vsel %vm912, 1, 0
        %v1858 = vsel %vm913, 1, 0
        %v1859 = vsel %vm914, 1, 0
        %v1860 = vsel %vm915, 1, 0
        %v1861 = vsel %vm916, 1, 0
        %v1862 = vsel %vm917, 1, 0
        %v1863 = vsel %vm918, 1, 0
        %v1864 = vsel %vm919, 1, 0
        %vm1865 = vcmp.eq.s32.totalorder %v1849, 1
        %vm1866 = vcmp.eq.s32.totalorder %v1850, 1
        %vm1867 = vcmp.eq.s32.totalorder %v1851, 1
        %vm1868 = vcmp.eq.s32.totalorder %v1852, 1
        %vm1869 = vcmp.eq.s32.totalorder %v1853, 1
        %vm1870 = vcmp.eq.s32.totalorder %v1854, 1
        %vm1871 = vcmp.eq.s32.totalorder %v1855, 1
        %vm1872 = vcmp.eq.s32.totalorder %v1856, 1
        %vm1873 = vcmp.eq.s32.totalorder %v1857, 1
        %vm1874 = vcmp.eq.s32.totalorder %v1858, 1
        %vm1875 = vcmp.eq.s32.totalorder %v1859, 1
        %vm1876 = vcmp.eq.s32.totalorder %v1860, 1
        %vm1877 = vcmp.eq.s32.totalorder %v1861, 1
        %vm1878 = vcmp.eq.s32.totalorder %v1862, 1
        %vm1879 = vcmp.eq.s32.totalorder %v1863, 1
        %vm1880 = vcmp.eq.s32.totalorder %v1864, 1
        %v1881 = vsel %vm1865, %v1785, -1e+30
        %v1882 = vsel %vm1865, %v1786, -1e+30
        %v1883 = vsel %vm1865, %v1787, -1e+30
        %v1884 = vsel %vm1865, %v1788, -1e+30
        %v1885 = vsel %vm1866, %v1789, -1e+30
        %v1886 = vsel %vm1866, %v1790, -1e+30
        %v1887 = vsel %vm1866, %v1791, -1e+30
        %v1888 = vsel %vm1866, %v1792, -1e+30
        %v1889 = vsel %vm1867, %v1793, -1e+30
        %v1890 = vsel %vm1867, %v1794, -1e+30
        %v1891 = vsel %vm1867, %v1795, -1e+30
        %v1892 = vsel %vm1867, %v1796, -1e+30
        %v1893 = vsel %vm1868, %v1797, -1e+30
        %v1894 = vsel %vm1868, %v1798, -1e+30
        %v1895 = vsel %vm1868, %v1799, -1e+30
        %v1896 = vsel %vm1868, %v1800, -1e+30
        %v1897 = vsel %vm1869, %v1801, -1e+30
        %v1898 = vsel %vm1869, %v1802, -1e+30
        %v1899 = vsel %vm1869, %v1803, -1e+30
        %v1900 = vsel %vm1869, %v1804, -1e+30
        %v1901 = vsel %vm1870, %v1805, -1e+30
        %v1902 = vsel %vm1870, %v1806, -1e+30
        %v1903 = vsel %vm1870, %v1807, -1e+30
        %v1904 = vsel %vm1870, %v1808, -1e+30
        %v1905 = vsel %vm1871, %v1809, -1e+30
        %v1906 = vsel %vm1871, %v1810, -1e+30
        %v1907 = vsel %vm1871, %v1811, -1e+30
        %v1908 = vsel %vm1871, %v1812, -1e+30
        %v1909 = vsel %vm1872, %v1813, -1e+30
        %v1910 = vsel %vm1872, %v1814, -1e+30
        %v1911 = vsel %vm1872, %v1815, -1e+30
        %v1912 = vsel %vm1872, %v1816, -1e+30
        %v1913 = vsel %vm1873, %v1817, -1e+30
        %v1914 = vsel %vm1873, %v1818, -1e+30
        %v1915 = vsel %vm1873, %v1819, -1e+30
        %v1916 = vsel %vm1873, %v1820, -1e+30
        %v1917 = vsel %vm1874, %v1821, -1e+30
        %v1918 = vsel %vm1874, %v1822, -1e+30
        %v1919 = vsel %vm1874, %v1823, -1e+30
        %v1920 = vsel %vm1874, %v1824, -1e+30
        %v1921 = vsel %vm1875, %v1825, -1e+30
        %v1922 = vsel %vm1875, %v1826, -1e+30
        %v1923 = vsel %vm1875, %v1827, -1e+30
        %v1924 = vsel %vm1875, %v1828, -1e+30
        %v1925 = vsel %vm1876, %v1829, -1e+30
        %v1926 = vsel %vm1876, %v1830, -1e+30
        %v1927 = vsel %vm1876, %v1831, -1e+30
        %v1928 = vsel %vm1876, %v1832, -1e+30
        %v1929 = vsel %vm1877, %v1833, -1e+30
        %v1930 = vsel %vm1877, %v1834, -1e+30
        %v1931 = vsel %vm1877, %v1835, -1e+30
        %v1932 = vsel %vm1877, %v1836, -1e+30
        %v1933 = vsel %vm1878, %v1837, -1e+30
        %v1934 = vsel %vm1878, %v1838, -1e+30
        %v1935 = vsel %vm1878, %v1839, -1e+30
        %v1936 = vsel %vm1878, %v1840, -1e+30
        %v1937 = vsel %vm1879, %v1841, -1e+30
        %v1938 = vsel %vm1879, %v1842, -1e+30
        %v1939 = vsel %vm1879, %v1843, -1e+30
        %v1940 = vsel %vm1879, %v1844, -1e+30
        %v1941 = vsel %vm1880, %v1845, -1e+30
        %v1942 = vsel %vm1880, %v1846, -1e+30
        %v1943 = vsel %vm1880, %v1847, -1e+30
        %v1944 = vsel %vm1880, %v1848, -1e+30
        %v1945 = vmax.f32 %v1881, %v1885
        %v1946 = vmax.f32 %v1945, %v1889
        %v1947 = vmax.f32 %v1946, %v1893
        %v1948 = vmax.f32 %v1947, %v1897
        %v1949 = vmax.f32 %v1948, %v1901
        %v1950 = vmax.f32 %v1949, %v1905
        %v1951 = vmax.f32 %v1950, %v1909
        %v1952 = vmax.f32 %v1951, %v1913
        %v1953 = vmax.f32 %v1952, %v1917
        %v1954 = vmax.f32 %v1953, %v1921
        %v1955 = vmax.f32 %v1954, %v1925
        %v1956 = vmax.f32 %v1955, %v1929
        %v1957 = vmax.f32 %v1956, %v1933
        %v1958 = vmax.f32 %v1957, %v1937
        %v1959 = vmax.f32 %v1958, %v1941
        %v1960 = vrot.slane %v1959, 4
        %v1961 = vmax.f32 %v1959, %v1960
        %v1962 = vrot.slane %v1961, 2
        %v1963 = vmax.f32 %v1961, %v1962
        %v1964 = vrot.slane %v1963, 1
        %v1965 = vmax.f32 %v1963, %v1964
        %v1966 = vmax.f32 %v1882, %v1886
        %v1967 = vmax.f32 %v1966, %v1890
        %v1968 = vmax.f32 %v1967, %v1894
        %v1969 = vmax.f32 %v1968, %v1898
        %v1970 = vmax.f32 %v1969, %v1902
        %v1971 = vmax.f32 %v1970, %v1906
        %v1972 = vmax.f32 %v1971, %v1910
        %v1973 = vmax.f32 %v1972, %v1914
        %v1974 = vmax.f32 %v1973, %v1918
        %v1975 = vmax.f32 %v1974, %v1922
        %v1976 = vmax.f32 %v1975, %v1926
        %v1977 = vmax.f32 %v1976, %v1930
        %v1978 = vmax.f32 %v1977, %v1934
        %v1979 = vmax.f32 %v1978, %v1938
        %v1980 = vmax.f32 %v1979, %v1942
        %v1981 = vrot.slane %v1980, 4
        %v1982 = vmax.f32 %v1980, %v1981
        %v1983 = vrot.slane %v1982, 2
        %v1984 = vmax.f32 %v1982, %v1983
        %v1985 = vrot.slane %v1984, 1
        %v1986 = vmax.f32 %v1984, %v1985
        %v1987 = vmax.f32 %v1883, %v1887
        %v1988 = vmax.f32 %v1987, %v1891
        %v1989 = vmax.f32 %v1988, %v1895
        %v1990 = vmax.f32 %v1989, %v1899
        %v1991 = vmax.f32 %v1990, %v1903
        %v1992 = vmax.f32 %v1991, %v1907
        %v1993 = vmax.f32 %v1992, %v1911
        %v1994 = vmax.f32 %v1993, %v1915
        %v1995 = vmax.f32 %v1994, %v1919
        %v1996 = vmax.f32 %v1995, %v1923
        %v1997 = vmax.f32 %v1996, %v1927
        %v1998 = vmax.f32 %v1997, %v1931
        %v1999 = vmax.f32 %v1998, %v1935
        %v2000 = vmax.f32 %v1999, %v1939
        %v2001 = vmax.f32 %v2000, %v1943
        %v2002 = vrot.slane %v2001, 4
        %v2003 = vmax.f32 %v2001, %v2002
        %v2004 = vrot.slane %v2003, 2
        %v2005 = vmax.f32 %v2003, %v2004
        %v2006 = vrot.slane %v2005, 1
        %v2007 = vmax.f32 %v2005, %v2006
        %v2008 = vmax.f32 %v1884, %v1888
        %v2009 = vmax.f32 %v2008, %v1892
        %v2010 = vmax.f32 %v2009, %v1896
        %v2011 = vmax.f32 %v2010, %v1900
        %v2012 = vmax.f32 %v2011, %v1904
        %v2013 = vmax.f32 %v2012, %v1908
        %v2014 = vmax.f32 %v2013, %v1912
        %v2015 = vmax.f32 %v2014, %v1916
        %v2016 = vmax.f32 %v2015, %v1920
        %v2017 = vmax.f32 %v2016, %v1924
        %v2018 = vmax.f32 %v2017, %v1928
        %v2019 = vmax.f32 %v2018, %v1932
        %v2020 = vmax.f32 %v2019, %v1936
        %v2021 = vmax.f32 %v2020, %v1940
        %v2022 = vmax.f32 %v2021, %v1944
        %v2023 = vrot.slane %v2022, 4
        %v2024 = vmax.f32 %v2022, %v2023
        %v2025 = vrot.slane %v2024, 2
        %v2026 = vmax.f32 %v2024, %v2025
        %v2027 = vrot.slane %v2026, 1
        %v2028 = vmax.f32 %v2026, %v2027
        %vm2029 = vcmp.eq.f32.partialorder %v1881, %v1965
        %vm2030 = vcmp.eq.f32.partialorder %v1882, %v1986
        %vm2031 = vcmp.eq.f32.partialorder %v1883, %v2007
        %vm2032 = vcmp.eq.f32.partialorder %v1884, %v2028
        %vm2033 = vcmp.eq.f32.partialorder %v1885, %v1965
        %vm2034 = vcmp.eq.f32.partialorder %v1886, %v1986
        %vm2035 = vcmp.eq.f32.partialorder %v1887, %v2007
        %vm2036 = vcmp.eq.f32.partialorder %v1888, %v2028
        %vm2037 = vcmp.eq.f32.partialorder %v1889, %v1965
        %vm2038 = vcmp.eq.f32.partialorder %v1890, %v1986
        %vm2039 = vcmp.eq.f32.partialorder %v1891, %v2007
        %vm2040 = vcmp.eq.f32.partialorder %v1892, %v2028
        %vm2041 = vcmp.eq.f32.partialorder %v1893, %v1965
        %vm2042 = vcmp.eq.f32.partialorder %v1894, %v1986
        %vm2043 = vcmp.eq.f32.partialorder %v1895, %v2007
        %vm2044 = vcmp.eq.f32.partialorder %v1896, %v2028
        %vm2045 = vcmp.eq.f32.partialorder %v1897, %v1965
        %vm2046 = vcmp.eq.f32.partialorder %v1898, %v1986
        %vm2047 = vcmp.eq.f32.partialorder %v1899, %v2007
        %vm2048 = vcmp.eq.f32.partialorder %v1900, %v2028
        %vm2049 = vcmp.eq.f32.partialorder %v1901, %v1965
        %vm2050 = vcmp.eq.f32.partialorder %v1902, %v1986
        %vm2051 = vcmp.eq.f32.partialorder %v1903, %v2007
        %vm2052 = vcmp.eq.f32.partialorder %v1904, %v2028
        %vm2053 = vcmp.eq.f32.partialorder %v1905, %v1965
        %vm2054 = vcmp.eq.f32.partialorder %v1906, %v1986
        %vm2055 = vcmp.eq.f32.partialorder %v1907, %v2007
        %vm2056 = vcmp.eq.f32.partialorder %v1908, %v2028
        %vm2057 = vcmp.eq.f32.partialorder %v1909, %v1965
        %vm2058 = vcmp.eq.f32.partialorder %v1910, %v1986
        %vm2059 = vcmp.eq.f32.partialorder %v1911, %v2007
        %vm2060 = vcmp.eq.f32.partialorder %v1912, %v2028
        %vm2061 = vcmp.eq.f32.partialorder %v1913, %v1965
        %vm2062 = vcmp.eq.f32.partialorder %v1914, %v1986
        %vm2063 = vcmp.eq.f32.partialorder %v1915, %v2007
        %vm2064 = vcmp.eq.f32.partialorder %v1916, %v2028
        %vm2065 = vcmp.eq.f32.partialorder %v1917, %v1965
        %vm2066 = vcmp.eq.f32.partialorder %v1918, %v1986
        %vm2067 = vcmp.eq.f32.partialorder %v1919, %v2007
        %vm2068 = vcmp.eq.f32.partialorder %v1920, %v2028
        %vm2069 = vcmp.eq.f32.partialorder %v1921, %v1965
        %vm2070 = vcmp.eq.f32.partialorder %v1922, %v1986
        %vm2071 = vcmp.eq.f32.partialorder %v1923, %v2007
        %vm2072 = vcmp.eq.f32.partialorder %v1924, %v2028
        %vm2073 = vcmp.eq.f32.partialorder %v1925, %v1965
        %vm2074 = vcmp.eq.f32.partialorder %v1926, %v1986
        %vm2075 = vcmp.eq.f32.partialorder %v1927, %v2007
        %vm2076 = vcmp.eq.f32.partialorder %v1928, %v2028
        %vm2077 = vcmp.eq.f32.partialorder %v1929, %v1965
        %vm2078 = vcmp.eq.f32.partialorder %v1930, %v1986
        %vm2079 = vcmp.eq.f32.partialorder %v1931, %v2007
        %vm2080 = vcmp.eq.f32.partialorder %v1932, %v2028
        %vm2081 = vcmp.eq.f32.partialorder %v1933, %v1965
        %vm2082 = vcmp.eq.f32.partialorder %v1934, %v1986
        %vm2083 = vcmp.eq.f32.partialorder %v1935, %v2007
        %vm2084 = vcmp.eq.f32.partialorder %v1936, %v2028
        %vm2085 = vcmp.eq.f32.partialorder %v1937, %v1965
        %vm2086 = vcmp.eq.f32.partialorder %v1938, %v1986
        %vm2087 = vcmp.eq.f32.partialorder %v1939, %v2007
        %vm2088 = vcmp.eq.f32.partialorder %v1940, %v2028
        %vm2089 = vcmp.eq.f32.partialorder %v1941, %v1965
        %vm2090 = vcmp.eq.f32.partialorder %v1942, %v1986
        %vm2091 = vcmp.eq.f32.partialorder %v1943, %v2007
        %vm2092 = vcmp.eq.f32.partialorder %v1944, %v2028
        %v2093 = vsel %vm2029, %v888, 1073741824
        %v2094 = vsel %vm2030, %v888, 1073741824
        %v2095 = vsel %vm2031, %v888, 1073741824
        %v2096 = vsel %vm2032, %v888, 1073741824
        %v2097 = vsel %vm2033, %v889, 1073741824
        %v2098 = vsel %vm2034, %v889, 1073741824
        %v2099 = vsel %vm2035, %v889, 1073741824
        %v2100 = vsel %vm2036, %v889, 1073741824
        %v2101 = vsel %vm2037, %v890, 1073741824
        %v2102 = vsel %vm2038, %v890, 1073741824
        %v2103 = vsel %vm2039, %v890, 1073741824
        %v2104 = vsel %vm2040, %v890, 1073741824
        %v2105 = vsel %vm2041, %v891, 1073741824
        %v2106 = vsel %vm2042, %v891, 1073741824
        %v2107 = vsel %vm2043, %v891, 1073741824
        %v2108 = vsel %vm2044, %v891, 1073741824
        %v2109 = vsel %vm2045, %v892, 1073741824
        %v2110 = vsel %vm2046, %v892, 1073741824
        %v2111 = vsel %vm2047, %v892, 1073741824
        %v2112 = vsel %vm2048, %v892, 1073741824
        %v2113 = vsel %vm2049, %v893, 1073741824
        %v2114 = vsel %vm2050, %v893, 1073741824
        %v2115 = vsel %vm2051, %v893, 1073741824
        %v2116 = vsel %vm2052, %v893, 1073741824
        %v2117 = vsel %vm2053, %v894, 1073741824
        %v2118 = vsel %vm2054, %v894, 1073741824
        %v2119 = vsel %vm2055, %v894, 1073741824
        %v2120 = vsel %vm2056, %v894, 1073741824
        %v2121 = vsel %vm2057, %v895, 1073741824
        %v2122 = vsel %vm2058, %v895, 1073741824
        %v2123 = vsel %vm2059, %v895, 1073741824
        %v2124 = vsel %vm2060, %v895, 1073741824
        %v2125 = vsel %vm2061, %v896, 1073741824
        %v2126 = vsel %vm2062, %v896, 1073741824
        %v2127 = vsel %vm2063, %v896, 1073741824
        %v2128 = vsel %vm2064, %v896, 1073741824
        %v2129 = vsel %vm2065, %v897, 1073741824
        %v2130 = vsel %vm2066, %v897, 1073741824
        %v2131 = vsel %vm2067, %v897, 1073741824
        %v2132 = vsel %vm2068, %v897, 1073741824
        %v2133 = vsel %vm2069, %v898, 1073741824
        %v2134 = vsel %vm2070, %v898, 1073741824
        %v2135 = vsel %vm2071, %v898, 1073741824
        %v2136 = vsel %vm2072, %v898, 1073741824
        %v2137 = vsel %vm2073, %v899, 1073741824
        %v2138 = vsel %vm2074, %v899, 1073741824
        %v2139 = vsel %vm2075, %v899, 1073741824
        %v2140 = vsel %vm2076, %v899, 1073741824
        %v2141 = vsel %vm2077, %v900, 1073741824
        %v2142 = vsel %vm2078, %v900, 1073741824
        %v2143 = vsel %vm2079, %v900, 1073741824
        %v2144 = vsel %vm2080, %v900, 1073741824
        %v2145 = vsel %vm2081, %v901, 1073741824
        %v2146 = vsel %vm2082, %v901, 1073741824
        %v2147 = vsel %vm2083, %v901, 1073741824
        %v2148 = vsel %vm2084, %v901, 1073741824
        %v2149 = vsel %vm2085, %v902, 1073741824
        %v2150 = vsel %vm2086, %v902, 1073741824
        %v2151 = vsel %vm2087, %v902, 1073741824
        %v2152 = vsel %vm2088, %v902, 1073741824
        %v2153 = vsel %vm2089, %v903, 1073741824
        %v2154 = vsel %vm2090, %v903, 1073741824
        %v2155 = vsel %vm2091, %v903, 1073741824
        %v2156 = vsel %vm2092, %v903, 1073741824
        %vm2157 = vcmp.lt.s32.totalorder %v2093, %v2097
        %v2158 = vsel %vm2157, %v2093, %v2097
        %vm2159 = vcmp.lt.s32.totalorder %v2158, %v2101
        %v2160 = vsel %vm2159, %v2158, %v2101
        %vm2161 = vcmp.lt.s32.totalorder %v2160, %v2105
        %v2162 = vsel %vm2161, %v2160, %v2105
        %vm2163 = vcmp.lt.s32.totalorder %v2162, %v2109
        %v2164 = vsel %vm2163, %v2162, %v2109
        %vm2165 = vcmp.lt.s32.totalorder %v2164, %v2113
        %v2166 = vsel %vm2165, %v2164, %v2113
        %vm2167 = vcmp.lt.s32.totalorder %v2166, %v2117
        %v2168 = vsel %vm2167, %v2166, %v2117
        %vm2169 = vcmp.lt.s32.totalorder %v2168, %v2121
        %v2170 = vsel %vm2169, %v2168, %v2121
        %vm2171 = vcmp.lt.s32.totalorder %v2170, %v2125
        %v2172 = vsel %vm2171, %v2170, %v2125
        %vm2173 = vcmp.lt.s32.totalorder %v2172, %v2129
        %v2174 = vsel %vm2173, %v2172, %v2129
        %vm2175 = vcmp.lt.s32.totalorder %v2174, %v2133
        %v2176 = vsel %vm2175, %v2174, %v2133
        %vm2177 = vcmp.lt.s32.totalorder %v2176, %v2137
        %v2178 = vsel %vm2177, %v2176, %v2137
        %vm2179 = vcmp.lt.s32.totalorder %v2178, %v2141
        %v2180 = vsel %vm2179, %v2178, %v2141
        %vm2181 = vcmp.lt.s32.totalorder %v2180, %v2145
        %v2182 = vsel %vm2181, %v2180, %v2145
        %vm2183 = vcmp.lt.s32.totalorder %v2182, %v2149
        %v2184 = vsel %vm2183, %v2182, %v2149
        %vm2185 = vcmp.lt.s32.totalorder %v2184, %v2153
        %v2186 = vsel %vm2185, %v2184, %v2153
        %v2187 = vrot.slane %v2186, 4
        %vm2188 = vcmp.lt.s32.totalorder %v2186, %v2187
        %v2189 = vsel %vm2188, %v2186, %v2187
        %v2190 = vrot.slane %v2189, 2
        %vm2191 = vcmp.lt.s32.totalorder %v2189, %v2190
        %v2192 = vsel %vm2191, %v2189, %v2190
        %v2193 = vrot.slane %v2192, 1
        %vm2194 = vcmp.lt.s32.totalorder %v2192, %v2193
        %v2195 = vsel %vm2194, %v2192, %v2193
        %vm2196 = vcmp.lt.s32.totalorder %v2094, %v2098
        %v2197 = vsel %vm2196, %v2094, %v2098
        %vm2198 = vcmp.lt.s32.totalorder %v2197, %v2102
        %v2199 = vsel %vm2198, %v2197, %v2102
        %vm2200 = vcmp.lt.s32.totalorder %v2199, %v2106
        %v2201 = vsel %vm2200, %v2199, %v2106
        %vm2202 = vcmp.lt.s32.totalorder %v2201, %v2110
        %v2203 = vsel %vm2202, %v2201, %v2110
        %vm2204 = vcmp.lt.s32.totalorder %v2203, %v2114
        %v2205 = vsel %vm2204, %v2203, %v2114
        %vm2206 = vcmp.lt.s32.totalorder %v2205, %v2118
        %v2207 = vsel %vm2206, %v2205, %v2118
        %vm2208 = vcmp.lt.s32.totalorder %v2207, %v2122
        %v2209 = vsel %vm2208, %v2207, %v2122
        %vm2210 = vcmp.lt.s32.totalorder %v2209, %v2126
        %v2211 = vsel %vm2210, %v2209, %v2126
        %vm2212 = vcmp.lt.s32.totalorder %v2211, %v2130
        %v2213 = vsel %vm2212, %v2211, %v2130
        %vm2214 = vcmp.lt.s32.totalorder %v2213, %v2134
        %v2215 = vsel %vm2214, %v2213, %v2134
        %vm2216 = vcmp.lt.s32.totalorder %v2215, %v2138
        %v2217 = vsel %vm2216, %v2215, %v2138
        %vm2218 = vcmp.lt.s32.totalorder %v2217, %v2142
        %v2219 = vsel %vm2218, %v2217, %v2142
        %vm2220 = vcmp.lt.s32.totalorder %v2219, %v2146
        %v2221 = vsel %vm2220, %v2219, %v2146
        %vm2222 = vcmp.lt.s32.totalorder %v2221, %v2150
        %v2223 = vsel %vm2222, %v2221, %v2150
        %vm2224 = vcmp.lt.s32.totalorder %v2223, %v2154
        %v2225 = vsel %vm2224, %v2223, %v2154
        %v2226 = vrot.slane %v2225, 4
        %vm2227 = vcmp.lt.s32.totalorder %v2225, %v2226
        %v2228 = vsel %vm2227, %v2225, %v2226
        %v2229 = vrot.slane %v2228, 2
        %vm2230 = vcmp.lt.s32.totalorder %v2228, %v2229
        %v2231 = vsel %vm2230, %v2228, %v2229
        %v2232 = vrot.slane %v2231, 1
        %vm2233 = vcmp.lt.s32.totalorder %v2231, %v2232
        %v2234 = vsel %vm2233, %v2231, %v2232
        %vm2235 = vcmp.lt.s32.totalorder %v2095, %v2099
        %v2236 = vsel %vm2235, %v2095, %v2099
        %vm2237 = vcmp.lt.s32.totalorder %v2236, %v2103
        %v2238 = vsel %vm2237, %v2236, %v2103
        %vm2239 = vcmp.lt.s32.totalorder %v2238, %v2107
        %v2240 = vsel %vm2239, %v2238, %v2107
        %vm2241 = vcmp.lt.s32.totalorder %v2240, %v2111
        %v2242 = vsel %vm2241, %v2240, %v2111
        %vm2243 = vcmp.lt.s32.totalorder %v2242, %v2115
        %v2244 = vsel %vm2243, %v2242, %v2115
        %vm2245 = vcmp.lt.s32.totalorder %v2244, %v2119
        %v2246 = vsel %vm2245, %v2244, %v2119
        %vm2247 = vcmp.lt.s32.totalorder %v2246, %v2123
        %v2248 = vsel %vm2247, %v2246, %v2123
        %vm2249 = vcmp.lt.s32.totalorder %v2248, %v2127
        %v2250 = vsel %vm2249, %v2248, %v2127
        %vm2251 = vcmp.lt.s32.totalorder %v2250, %v2131
        %v2252 = vsel %vm2251, %v2250, %v2131
        %vm2253 = vcmp.lt.s32.totalorder %v2252, %v2135
        %v2254 = vsel %vm2253, %v2252, %v2135
        %vm2255 = vcmp.lt.s32.totalorder %v2254, %v2139
        %v2256 = vsel %vm2255, %v2254, %v2139
        %vm2257 = vcmp.lt.s32.totalorder %v2256, %v2143
        %v2258 = vsel %vm2257, %v2256, %v2143
        %vm2259 = vcmp.lt.s32.totalorder %v2258, %v2147
        %v2260 = vsel %vm2259, %v2258, %v2147
        %vm2261 = vcmp.lt.s32.totalorder %v2260, %v2151
        %v2262 = vsel %vm2261, %v2260, %v2151
        %vm2263 = vcmp.lt.s32.totalorder %v2262, %v2155
        %v2264 = vsel %vm2263, %v2262, %v2155
        %v2265 = vrot.slane %v2264, 4
        %vm2266 = vcmp.lt.s32.totalorder %v2264, %v2265
        %v2267 = vsel %vm2266, %v2264, %v2265
        %v2268 = vrot.slane %v2267, 2
        %vm2269 = vcmp.lt.s32.totalorder %v2267, %v2268
        %v2270 = vsel %vm2269, %v2267, %v2268
        %v2271 = vrot.slane %v2270, 1
        %vm2272 = vcmp.lt.s32.totalorder %v2270, %v2271
        %v2273 = vsel %vm2272, %v2270, %v2271
        %vm2274 = vcmp.lt.s32.totalorder %v2096, %v2100
        %v2275 = vsel %vm2274, %v2096, %v2100
        %vm2276 = vcmp.lt.s32.totalorder %v2275, %v2104
        %v2277 = vsel %vm2276, %v2275, %v2104
        %vm2278 = vcmp.lt.s32.totalorder %v2277, %v2108
        %v2279 = vsel %vm2278, %v2277, %v2108
        %vm2280 = vcmp.lt.s32.totalorder %v2279, %v2112
        %v2281 = vsel %vm2280, %v2279, %v2112
        %vm2282 = vcmp.lt.s32.totalorder %v2281, %v2116
        %v2283 = vsel %vm2282, %v2281, %v2116
        %vm2284 = vcmp.lt.s32.totalorder %v2283, %v2120
        %v2285 = vsel %vm2284, %v2283, %v2120
        %vm2286 = vcmp.lt.s32.totalorder %v2285, %v2124
        %v2287 = vsel %vm2286, %v2285, %v2124
        %vm2288 = vcmp.lt.s32.totalorder %v2287, %v2128
        %v2289 = vsel %vm2288, %v2287, %v2128
        %vm2290 = vcmp.lt.s32.totalorder %v2289, %v2132
        %v2291 = vsel %vm2290, %v2289, %v2132
        %vm2292 = vcmp.lt.s32.totalorder %v2291, %v2136
        %v2293 = vsel %vm2292, %v2291, %v2136
        %vm2294 = vcmp.lt.s32.totalorder %v2293, %v2140
        %v2295 = vsel %vm2294, %v2293, %v2140
        %vm2296 = vcmp.lt.s32.totalorder %v2295, %v2144
        %v2297 = vsel %vm2296, %v2295, %v2144
        %vm2298 = vcmp.lt.s32.totalorder %v2297, %v2148
        %v2299 = vsel %vm2298, %v2297, %v2148
        %vm2300 = vcmp.lt.s32.totalorder %v2299, %v2152
        %v2301 = vsel %vm2300, %v2299, %v2152
        %vm2302 = vcmp.lt.s32.totalorder %v2301, %v2156
        %v2303 = vsel %vm2302, %v2301, %v2156
        %v2304 = vrot.slane %v2303, 4
        %vm2305 = vcmp.lt.s32.totalorder %v2303, %v2304
        %v2306 = vsel %vm2305, %v2303, %v2304
        %v2307 = vrot.slane %v2306, 2
        %vm2308 = vcmp.lt.s32.totalorder %v2306, %v2307
        %v2309 = vsel %vm2308, %v2306, %v2307
        %v2310 = vrot.slane %v2309, 1
        %vm2311 = vcmp.lt.s32.totalorder %v2309, %v2310
        %v2312 = vsel %vm2311, %v2309, %v2310
        %v2313 = vld [vmem:[%s290] sm:$0xf]
        %v2315 = vlaneseq
        %v2316 = vshrl.u32 %v2315, 7
        %v2317 = vsub.s32 0, %v2316
        %v2318 = vrot.slane %v2313, %v2317
        %v2319 = vlaneseq
        %v2320 = vshrl.u32 %v2319, 7
        %v2321 = vsub.s32 1, %v2320
        %v2322 = vrot.slane %v2313, %v2321
        %v2323 = vlaneseq
        %v2324 = vshrl.u32 %v2323, 7
        %v2325 = vsub.s32 2, %v2324
        %v2326 = vrot.slane %v2313, %v2325
        %v2327 = vlaneseq
        %v2328 = vshrl.u32 %v2327, 7
        %v2329 = vsub.s32 3, %v2328
        %v2330 = vrot.slane %v2313, %v2329
        %vm2335 = vcmp.gt.f32.partialorder %v1965, %v2318
        %vm2336 = vcmp.gt.f32.partialorder %v1986, %v2322
        %vm2337 = vcmp.gt.f32.partialorder %v2007, %v2326
        %vm2338 = vcmp.gt.f32.partialorder %v2028, %v2330
        %v2339 = vsel %vm2335, %v1965, %v2318
        %v2340 = vsel %vm2336, %v1986, %v2322
        %v2341 = vsel %vm2337, %v2007, %v2326
        %v2342 = vsel %vm2338, %v2028, %v2330
        %v2347 = vcombine.low %v2339, %v2340
        %v2348 = vcombine.low %v2341, %v2342
        %v2350 = vunpack.c.l.s4 1966171168
        %v2351 = vunpack.c.0.s8 %v2350
        %v2352 = vlaneseq
        %v2353 = vshrl.u32 %v2352, 7
        %v2354 = vsub.s32 %v2351, %v2353
        %v2355 = vrot.slane %v2347, %v2354
        %v2357 = vunpack.c.l.s4 1966171168
        %v2358 = vunpack.c.0.s8 %v2357
        %v2359 = vlaneseq
        %v2360 = vshrl.u32 %v2359, 7
        %v2361 = vsub.s32 %v2358, %v2360
        %v2362 = vrot.slane %v2348, %v2361
        %v2363 = vcombine.low %v2355, %v2362
        %v2365 = vunpack.c.l.s4 1966171168
        %v2366 = vunpack.c.0.s8 %v2365
        %v2367 = vlaneseq
        %v2368 = vshrl.u32 %v2367, 7
        %v2369 = vsub.s32 %v2366, %v2368
        %v2370 = vrot.slane %v2363, %v2369
        %2372 = vst.msk [vmem:[%s290] sm:$0xf] %vm1766, %v2370
        %v2373 = vld [vmem:[%s297] sm:$0xf]
        %v2374 = vlaneseq
        %v2375 = vshrl.u32 %v2374, 7
        %v2376 = vsub.s32 0, %v2375
        %v2377 = vrot.slane %v2373, %v2376
        %v2378 = vlaneseq
        %v2379 = vshrl.u32 %v2378, 7
        %v2380 = vsub.s32 1, %v2379
        %v2381 = vrot.slane %v2373, %v2380
        %v2382 = vlaneseq
        %v2383 = vshrl.u32 %v2382, 7
        %v2384 = vsub.s32 2, %v2383
        %v2385 = vrot.slane %v2373, %v2384
        %v2386 = vlaneseq
        %v2387 = vshrl.u32 %v2386, 7
        %v2388 = vsub.s32 3, %v2387
        %v2389 = vrot.slane %v2373, %v2388
        %v2390 = vsel %vm2335, %v2195, %v2377
        %v2391 = vsel %vm2336, %v2234, %v2381
        %v2392 = vsel %vm2337, %v2273, %v2385
        %v2393 = vsel %vm2338, %v2312, %v2389
        %v2394 = vcombine.low %v2390, %v2391
        %v2395 = vcombine.low %v2392, %v2393
        %v2397 = vunpack.c.l.s4 1966171168
        %v2398 = vunpack.c.0.s8 %v2397
        %v2399 = vlaneseq
        %v2400 = vshrl.u32 %v2399, 7
        %v2401 = vsub.s32 %v2398, %v2400
        %v2402 = vrot.slane %v2394, %v2401
        %v2404 = vunpack.c.l.s4 1966171168
        %v2405 = vunpack.c.0.s8 %v2404
        %v2406 = vlaneseq
        %v2407 = vshrl.u32 %v2406, 7
        %v2408 = vsub.s32 %v2405, %v2407
        %v2409 = vrot.slane %v2395, %v2408
        %v2410 = vcombine.low %v2402, %v2409
        %v2412 = vunpack.c.l.s4 1966171168
        %v2413 = vunpack.c.0.s8 %v2412
        %v2414 = vlaneseq
        %v2415 = vshrl.u32 %v2414, 7
        %v2416 = vsub.s32 %v2413, %v2415
        %v2417 = vrot.slane %v2410, %v2416
        %2418 = vst.msk [vmem:[%s297] sm:$0xf] %vm1766, %v2417
        %p2419 = scmp.eq.s32.totalorder %s32, 1
        // Predicated region
        $region41: #{tpu_custom_call.1} parent=27 // pred_check
          %p2420 = pneg %p2419
        $region42: #{tpu_custom_call.1} parent=27 // pred_check_branch
          %2422 = sbr.rel (%p2420) target = $region44
        $region43: #{tpu_custom_call.1} parent=27 // pred_region
          %v2423 = vld [vmem:[#allocation2] sm:$0xf]
          %v2424 = vld [vmem:[#allocation3] sm:$0xf]
          %v2425 = vlog2.pop %v2424
          %v2426 = vmul.f32 %v2425, 0.6931472
          %v2427 = vadd.f32 %v2423, %v2426
          %2428 = vst.msk [vmem:[%s283] sm:$0xf] %vm1766, %v2427
        $region44: #{tpu_custom_call.1} parent=27 // pred_fallthru
          _
        %s2429 = sand.u32 %s98, 1
        %s2430 = scalar_lea.sflag [#allocation6], %s2429
        %s2431 = sand.u32 %s98, 1
        %s2432 = smul.addr %s2431, 4
        %s2433 = scalar_lea.vmem [#allocation9], %s2432
        %s2434 = sand.u32 %s27, 1
        %s2435 = scalar_lea.sflag [#allocation11], %s2434
        %s2436 = sand.u32 %s124, 1
        %s2437 = smul.addr %s2436, 4
        %s2438 = scalar_lea.vmem [#allocation10], %s2437
        %s2439 = sand.u32 %s27, 1
        %s2440 = scalar_lea.sflag [#allocation11], %s2439
        %s2441 = sand.u32 %s150, 1
        %s2442 = smul.addr %s2441, 4
        %s2443 = scalar_lea.vmem [#allocation12], %s2442
        %s2444 = smul.u32 %s31, 2
        %s2445 = sadd.s32 %s2444, %s32
        %s2446 = smul.u32 16, %s2445
        %p2447 = scmp.lt.s32.totalorder %s2446, 63
        %s2448 = scalar_select %p2447, %s2446, 63
        %s2449 = smul.addr %s2448, 8
        %s2450 = scalar_lea.vmem %s5, %s2449
        // Predicated region
        $region45: #{tpu_custom_call.1} parent=27 // pred_check
          %p2451 = pneg %p108
        $region46: #{tpu_custom_call.1} parent=27 // pred_check_branch
          %2453 = sbr.rel (%p2451) target = $region48
        $region47: #{tpu_custom_call.1} parent=27 // pred_region
          %s2455 = ssub.s32 64, 64
          %2456 = vsyncadd %s2430, %s2455
          %s2457 = smul.addr %s31, 4
          %s2458 = smul.addr %s2457, 16
          %s2459 = scalar_lea.hbm %s2, %s2458
          %s2461 = sshll.u32 %s2433, 4
          %s2462 = int_to_ptr.vmem [resolvable:$true] %s2461
          %2464 = dma.vmem_to_hbm [thread:$0]  %s2462, 64, %s2459, %s2430
        $region48: #{tpu_custom_call.1} parent=27 // pred_fallthru
          _
        // Predicated region
        $region49: #{tpu_custom_call.1} parent=27 // pred_check
          %p2465 = pneg %p134
        $region50: #{tpu_custom_call.1} parent=27 // pred_check_branch
          %2467 = sbr.rel (%p2465) target = $region52
        $region51: #{tpu_custom_call.1} parent=27 // pred_region
          %s2469 = ssub.s32 64, 64
          %2470 = vsyncadd %s2435, %s2469
          %s2471 = smul.addr %s31, 4
          %s2472 = smul.addr %s2471, 16
          %s2473 = scalar_lea.hbm %s3, %s2472
          %s2475 = sshll.u32 %s2438, 4
          %s2476 = int_to_ptr.vmem [resolvable:$true] %s2475
          %2478 = dma.vmem_to_hbm [thread:$0]  %s2476, 64, %s2473, %s2435
        $region52: #{tpu_custom_call.1} parent=27 // pred_fallthru
          _
        // Predicated region
        $region53: #{tpu_custom_call.1} parent=27 // pred_check
          %p2479 = pneg %p160
        $region54: #{tpu_custom_call.1} parent=27 // pred_check_branch
          %2481 = sbr.rel (%p2479) target = $region56
        $region55: #{tpu_custom_call.1} parent=27 // pred_region
          %s2483 = ssub.s32 64, 64
          %2484 = vsyncadd %s2440, %s2483
          %s2485 = smul.addr %s31, 4
          %s2486 = smul.addr %s2485, 16
          %s2487 = scalar_lea.hbm %s4, %s2486
          %s2489 = sshll.u32 %s2443, 4
          %s2490 = int_to_ptr.vmem [resolvable:$true] %s2489
          %2492 = dma.vmem_to_hbm [thread:$0]  %s2490, 64, %s2487, %s2440
        $region56: #{tpu_custom_call.1} parent=27 // pred_fallthru
          _
        // Predicated region
        $region57: #{tpu_custom_call.1} parent=27 // pred_check
          %p2493 = pneg %p190
        $region58: #{tpu_custom_call.1} parent=27 // pred_check_branch
          %2495 = sbr.rel (%p2493) target = $region60
        $region59: #{tpu_custom_call.1} parent=27 // pred_region
          %s2496 = smul.u32 %s31, 2
          %s2497 = sadd.s32 %s2496, %s32
          %s2498 = smul.u32 16, %s2497
        $region60: #{tpu_custom_call.1} parent=27 // pred_fallthru
          _
      $region28: #{tpu_custom_call.1} parent=5 // pred_fallthru
        _
      %p2499 = scmp.le.s32.totalorder 2, %s22
      // Predicated region
      $region61: #{tpu_custom_call.1} parent=5 // pred_check
        %p2500 = pneg %p2499
      $region62: #{tpu_custom_call.1} parent=5 // pred_check_branch
        %2502 = sbr.rel (%p2500) target = $region64
      $region63: #{tpu_custom_call.1} parent=5 // pred_region
        %s2503 = ssub.s32 %s22, 2
        // Predicated region
        $region65: #{tpu_custom_call.1} parent=63 // pred_check
          %p2504 = pneg %p114
        $region66: #{tpu_custom_call.1} parent=63 // pred_check_branch
          %2506 = sbr.rel (%p2504) target = $region68
        $region67: #{tpu_custom_call.1} parent=63 // pred_region
          %s2507 = sand.u32 %s99, 1
          %s2508 = scalar_lea.sflag [#allocation6], %s2507
          %s2509 = sand.u32 %s99, 1
          %s2510 = smul.addr %s2509, 4
          %s2511 = scalar_lea.vmem [#allocation9], %s2510
          %2512 = dma.done %s2508, 64
        $region68: #{tpu_custom_call.1} parent=63 // pred_fallthru
          _
        // Predicated region
        $region69: #{tpu_custom_call.1} parent=63 // pred_check
          %p2513 = pneg %p140
        $region70: #{tpu_custom_call.1} parent=63 // pred_check_branch
          %2515 = sbr.rel (%p2513) target = $region72
        $region71: #{tpu_custom_call.1} parent=63 // pred_region
          %s2516 = sand.u32 %s28, 1
          %s2517 = scalar_lea.sflag [#allocation11], %s2516
          %s2518 = sand.u32 %s125, 1
          %s2519 = smul.addr %s2518, 4
          %s2520 = scalar_lea.vmem [#allocation10], %s2519
          %2521 = dma.done %s2517, 64
        $region72: #{tpu_custom_call.1} parent=63 // pred_fallthru
          _
        // Predicated region
        $region73: #{tpu_custom_call.1} parent=63 // pred_check
          %p2522 = pneg %p166
        $region74: #{tpu_custom_call.1} parent=63 // pred_check_branch
          %2524 = sbr.rel (%p2522) target = $region76
        $region75: #{tpu_custom_call.1} parent=63 // pred_region
          %s2525 = sand.u32 %s28, 1
          %s2526 = scalar_lea.sflag [#allocation11], %s2525
          %s2527 = sand.u32 %s151, 1
          %s2528 = smul.addr %s2527, 4
          %s2529 = scalar_lea.vmem [#allocation12], %s2528
          %2530 = dma.done %s2526, 64
        $region76: #{tpu_custom_call.1} parent=63 // pred_fallthru
          _
        // Predicated region
        $region77: #{tpu_custom_call.1} parent=63 // pred_check
          %p2531 = pneg %p196
        $region78: #{tpu_custom_call.1} parent=63 // pred_check_branch
          %2533 = sbr.rel (%p2531) target = $region80
        $region79: #{tpu_custom_call.1} parent=63 // pred_region
          %s2534 = smul.u32 %s33, 2
          %s2535 = sadd.s32 %s2534, %s34
          %s2536 = smul.u32 16, %s2535
          %p2537 = scmp.lt.s32.totalorder %s2536, 63
          %s2538 = scalar_select %p2537, %s2536, 63
          %s2539 = smul.addr %s2538, 8
          %s2540 = scalar_lea.vmem %s5, %s2539
        $region80: #{tpu_custom_call.1} parent=63 // pred_fallthru
          _
      $region64: #{tpu_custom_call.1} parent=5 // pred_fallthru
        _
    $region6: #{tpu_custom_call.1} parent=1 // loop_footer
      %s26 = sadd.s32 1, %s22
    $region7: #{tpu_custom_call.1} parent=1 // loop_footer_branch
      %21 = sbr.rel target = $region3
    $region8: #{tpu_custom_call.1} parent=1 // loop_exit
      _
    %2541 = vsyncpa [#allocation5], 1
    %s2542 = scalar_lea.sflag [#allocation5], 1
    %2543 = vsyncpa %s2542, 1
    %2544 = vsyncpa [#allocation8], 1
    %2545 = vsyncpa [#allocation6], 1
    %s2546 = scalar_lea.sflag [#allocation6], 1
    %2547 = vsyncpa %s2546, 1
    %2548 = vsyncpa [#allocation11], 1
    %s2549 = scalar_lea.sflag [#allocation11], 1
    %2550 = vsyncpa %s2549, 1

</llo_original>
